<compile_context>
chip_gen: v6e
topology: v6e:2x2x1
jax: 0.10.0
libtpu: 0.0.40
codegen_flags: <defaults>
</compile_context>

<pallas_src>
import functools

import jax
import jax.numpy as jnp
from jax import lax
from jax.experimental import pallas as pl
from jax.experimental.pallas import tpu as pltpu

LANE = 128          # TPU lane width: H and O are padded to this inside the kernel
NEG_INF = -1e30     # bias for padded logit columns -> excluded from log-softmax


def rnn_seq_kernel(cat_ref, x_ref, h0_ref,
                   w_cat_ref, w_inp_ref, w_hid_ref, b_io_ref,
                   w_o2o_ref, b_o2o_ref,
                   out_ref, hid_ref,
                   h_scr, pre_scr, *, h_pad, batch, t_chunk, unroll):
    """Runs `t_chunk` RNN steps; the grid iterates over sequence chunks.

    cat_ref:   (B, n_cat)           bf16  one-hot category (resident)
    x_ref:     (t_chunk*B, I)       bf16  this chunk's one-hot letters (flat)
    h0_ref:    (B, h_pad)           f32   initial hidden (zero-padded)
    w_cat/inp/hid_ref: (*, 2*LANE)  bf16  fused [W_i2h | W_i2o] row blocks
    b_io_ref:  (1, 2*LANE)          f32
    w_o2o_ref: (2*LANE, o_pad)      bf16  stacked so ho @ w_o2o == o2o(cat(h,o))
    b_o2o_ref: (1, o_pad)           f32   (-1e30 on padded columns)
    out_ref:   (t_chunk, B, o_pad)  f32   per-step log-softmax (lane dense)
    hid_ref:   (B, h_pad)           f32   final hidden (written on last chunk)
    h_scr:     (B, h_pad)           VMEM  recurrent carry across chunks
    pre_scr:   (t_chunk*B, 2*LANE)  VMEM  precomputed input projections
    """
    c = pl.program_id(0)

    @pl.when(c == 0)
    def _():
        h_scr[...] = h0_ref[...]

    # --- hoisted / batched work (off the serial recurrence) -----------------
    # Time-invariant category projection + fused i2h|i2o bias, computed once.
    base = (jnp.dot(cat_ref[...], w_cat_ref[...],
                    preferred_element_type=jnp.float32)
            + b_io_ref[...])                                   # (B, 2*LANE) f32

    # Input projection for the whole chunk in one MXU pass (good row util).
    pre_scr[...] = jnp.dot(x_ref[...], w_inp_ref[...],
                           preferred_element_type=jnp.float32)

    w_hid = w_hid_ref[...]
    w_o2o = w_o2o_ref[...]

    # --- serial recurrence: one K=h_pad + one K=2*LANE matmul per step ------
    def step(t, h):
        r = pl.multiple_of(t * batch, batch)
        ho = (pre_scr[pl.ds(r, batch), :] + base
              + jnp.dot(h.astype(jnp.bfloat16), w_hid,
                        preferred_element_type=jnp.float32))    # (B, 2*LANE)
        # ho == cat((hidden_new, output), 1) exactly -> single fused o2o matmul
        out_ref[t] = jnp.dot(ho.astype(jnp.bfloat16), w_o2o,
                             preferred_element_type=jnp.float32)  # raw logits
        return ho[:, :h_pad]                                     # new hidden

    h_final = lax.fori_loop(0, t_chunk, step, h_scr[...], unroll=unroll)
    h_scr[...] = h_final

    # --- deferred o2o bias + LogSoftmax over the whole chunk ----------------
    # TODO(synk): nn.Dropout(0.1) is identity in eval mode; training-mode random
    # masking (pltpu.prng_seed / prng_random_bits) is not implemented.
    # Padded logit columns carry a -1e30 bias so exp() == 0 exactly in f32.
    logits = out_ref[...] + b_o2o_ref[...][None]        # (t_chunk, B, o_pad)
    m = jnp.max(logits, axis=-1, keepdims=True)
    z = logits - m
    lse = jnp.log(jnp.sum(jnp.exp(z), axis=-1, keepdims=True))
    out_ref[...] = z - lse

    @pl.when(c == pl.num_programs(0) - 1)
    def _():
        hid_ref[...] = h_final


def prepare_weights(params, n_categories, input_size, hidden_size, output_size,
                    h_pad=LANE, o_pad=LANE):
    """One-time layout work hoisted out of the per-step path: transpose to
    (in, out), split input-side weights into category/input/hidden row blocks,
    fuse i2h|i2o column-wise, stack o2o row-wise (so a single K=256 matmul on
    ho == [h_new | o] reproduces o2o(cat(h, o))), pad H/O to the lane width,
    cast weights to bf16 (f32 accumulation in-kernel), keep biases f32, and
    give padded logit columns a -1e30 bias."""
    H, O, I, C = hidden_size, output_size, input_size, n_categories

    def pad_to(w, rows, cols):
        out = jnp.zeros((rows, cols), jnp.float32)
        return out.at[:w.shape[0], :w.shape[1]].set(w.astype(jnp.float32))

    w_i2h_t = params["w_i2h"].T            # (C+I+H, H)
    w_i2o_t = params["w_i2o"].T            # (C+I+H, O)
    w_o2o_t = params["w_o2o"].T            # (H+O, O)

    def fuse_rows(r0, r1, rows_pad):
        return jnp.concatenate(
            [pad_to(w_i2h_t[r0:r1], rows_pad, h_pad),
             pad_to(w_i2o_t[r0:r1], rows_pad, o_pad)], axis=1)

    w_cat = fuse_rows(0, C, C).astype(jnp.bfloat16)              # (C, 256)
    w_inp = fuse_rows(C, C + I, I).astype(jnp.bfloat16)          # (I, 256)
    w_hid = fuse_rows(C + I, C + I + H, h_pad).astype(jnp.bfloat16)  # (128, 256)
    b_io = jnp.concatenate(
        [pad_to(params["b_i2h"].reshape(1, H), 1, h_pad),
         pad_to(params["b_i2o"].reshape(1, O), 1, o_pad)], axis=1)   # (1, 256) f32

    # o2o weight stacked so that [h_new | o] @ w_o2o == o2o(cat(h_new, o)).
    w_o2o = jnp.concatenate(
        [pad_to(w_o2o_t[:H, :], h_pad, o_pad),
         pad_to(w_o2o_t[H:, :], o_pad, o_pad)], axis=0).astype(jnp.bfloat16)
    b_o2o = jnp.full((1, o_pad), NEG_INF, jnp.float32).at[0, :O].set(
        params["b_o2o"].astype(jnp.float32))

    return (w_cat, w_inp, w_hid, b_io, w_o2o, b_o2o)


def rnn_sequence_forward(category, inputs, hidden, params,
                         h_pad=LANE, o_pad=LANE, t_chunk=None):
    """Run the RNN cell over a whole sequence in ONE pallas_call.

    category: (B, n_cat)  inputs: (T, B, input_size)  hidden: (B, H)
    Returns (log_softmax_outputs (T, B, O), final_hidden (B, H)) — identical to
    applying RNN.forward T times with the hidden carried between steps.
    """
    T, B, I = inputs.shape
    C = category.shape[1]
    H = params["w_i2h"].shape[0]            # torch Linear weight is (out, in)
    O = params["w_i2o"].shape[0]
    HO = h_pad + o_pad

    if t_chunk is None:
        t_chunk = T                          # whole sequence in one chunk
    assert T % t_chunk == 0
    n_chunks = T // t_chunk
    unroll = True if t_chunk <= 16 else 8

    weights = prepare_weights(params, C, I, H, O, h_pad, o_pad)
    h0 = jnp.zeros((B, h_pad), jnp.float32).at[:, :H].set(hidden.astype(jnp.float32))

    cat_bf = category.astype(jnp.bfloat16)
    x_flat = inputs.astype(jnp.bfloat16).reshape(T * B, I)   # flat for batched matmul

    const2 = lambda c: (0, 0)
    operands = (cat_bf, x_flat, h0) + weights

    in_specs = [
        pl.BlockSpec((B, C), const2),                        # category
        pl.BlockSpec((t_chunk * B, I), lambda c: (c, 0)),    # inputs chunk (flat)
        pl.BlockSpec((B, h_pad), const2),                    # h0
        pl.BlockSpec((C, HO), const2),                       # w_cat (fused)
        pl.BlockSpec((I, HO), const2),                       # w_inp (fused)
        pl.BlockSpec((h_pad, HO), const2),                   # w_hid (fused)
        pl.BlockSpec((1, HO), const2),                       # b_io
        pl.BlockSpec((HO, o_pad), const2),                   # w_o2o (stacked)
        pl.BlockSpec((1, o_pad), const2),                    # b_o2o
    ]
    out_specs = [
        pl.BlockSpec((t_chunk, B, o_pad), lambda c: (c, 0, 0)),  # log-softmax
        pl.BlockSpec((B, h_pad), const2),                        # final hidden
    ]
    out_shape = (jax.ShapeDtypeStruct((T, B, o_pad), jnp.float32),
                 jax.ShapeDtypeStruct((B, h_pad), jnp.float32))

    out_pad, hid_pad = pl.pallas_call(
        functools.partial(rnn_seq_kernel, h_pad=h_pad, batch=B,
                          t_chunk=t_chunk, unroll=unroll),
        grid=(n_chunks,),
        in_specs=in_specs,
        out_specs=out_specs,
        out_shape=out_shape,
        scratch_shapes=[pltpu.VMEM((B, h_pad), jnp.float32),        # h carry
                        pltpu.VMEM((t_chunk * B, HO), jnp.float32)],  # pre-proj
        compiler_params=pltpu.CompilerParams(
            dimension_semantics=("arbitrary",)),   # hidden carries across chunks
    )(*operands)

    return out_pad[:, :, :O], hid_pad[:, :H]


def rnn_forward(category, inp, hidden, params):
    """Single-step forward matching RNN.forward(category, input, hidden)."""
    out, hid = rnn_sequence_forward(category, inp[None], hidden, params)
    return out[0], hid


def init_params(key, n_categories, input_size, hidden_size, output_size):
    """Deterministic PyTorch-style uniform(-1/sqrt(fan_in), 1/sqrt(fan_in)) init."""
    C = n_categories + input_size + hidden_size
    HO = hidden_size + output_size
    ks = jax.random.split(key, 6)

    def lin(kw, kb, out_f, in_f):
        bound = 1.0 / jnp.sqrt(in_f)
        w = jax.random.uniform(kw, (out_f, in_f), jnp.float32, -bound, bound)
        b = jax.random.uniform(kb, (out_f,), jnp.float32, -bound, bound)
        return w, b

    w_i2h, b_i2h = lin(ks[0], ks[1], hidden_size, C)
    w_i2o, b_i2o = lin(ks[2], ks[3], output_size, C)
    w_o2o, b_o2o = lin(ks[4], ks[5], output_size, HO)
    return dict(w_i2h=w_i2h, b_i2h=b_i2h,
                w_i2o=w_i2o, b_i2o=b_i2o,
                w_o2o=w_o2o, b_o2o=b_o2o)


if __name__ == "__main__":
    B = 8                 # multiple of 8 sublanes (f32); torch code uses 1
    T = 8                 # sequence length handled by one pallas_call
    N_CATEGORIES = 8
    INPUT_SIZE = 32       # stand-in for N_LETTERS
    HIDDEN_SIZE = 32
    OUTPUT_SIZE = 32      # stand-in for N_LETTERS

    key = jax.random.PRNGKey(0)
    k_cat, k_inp, k_par = jax.random.split(key, 3)

    cat_idx = jax.random.randint(k_cat, (B,), 0, N_CATEGORIES)
    category = jax.nn.one_hot(cat_idx, N_CATEGORIES, dtype=jnp.float32)
    inp_idx = jax.random.randint(k_inp, (T, B), 0, INPUT_SIZE)
    inputs = jax.nn.one_hot(inp_idx, INPUT_SIZE, dtype=jnp.float32)     # (T, B, I)
    hidden0 = jnp.zeros((B, HIDDEN_SIZE), jnp.float32)                  # initHidden

    params = init_params(k_par, N_CATEGORIES, INPUT_SIZE, HIDDEN_SIZE, OUTPUT_SIZE)

    outputs, final_hidden = rnn_sequence_forward(category, inputs, hidden0, params)
    jax.block_until_ready((outputs, final_hidden))

    # pure-JAX reference: apply the module's forward T times
    def ref_step(cat, x, h, p):
        xc = jnp.concatenate([cat, x, h], axis=1)
        h_new = xc @ p["w_i2h"].T + p["b_i2h"]
        o = xc @ p["w_i2o"].T + p["b_i2o"]
        oc = jnp.concatenate([h_new, o], axis=1)
        o2 = oc @ p["w_o2o"].T + p["b_o2o"]
        return jax.nn.log_softmax(o2, axis=1), h_new

    h = hidden0
    ref_outs = []
    for t in range(T):
        o, h = ref_step(category, inputs[t], h, params)
        ref_outs.append(o)
    ref_out = jnp.stack(ref_outs)

    assert outputs.shape == (T, B, OUTPUT_SIZE)
    assert final_hidden.shape == (B, HIDDEN_SIZE)
    # log-softmax rows must sum (in prob space) to ~1
    assert jnp.allclose(jnp.sum(jnp.exp(outputs), axis=-1), 1.0, atol=1e-4)
    # matches reference forward (loose tol: bf16 matmul operands, f32 accumulation)
    assert jnp.max(jnp.abs(outputs - ref_out)) < 5e-2
    assert jnp.max(jnp.abs(final_hidden - h)) < 5e-2

    print("KERNEL_OK")
</pallas_src>

<mosaic_0001>
module attributes {stable_mosaic.version = 11 : i64} {
  func.func @rnn_seq_kernel(%arg0: i32, %arg1: memref<8x8xbf16, #tpu.memory_space<vmem>>, %arg2: memref<64x32xbf16, #tpu.memory_space<vmem>>, %arg3: memref<8x128xf32, #tpu.memory_space<vmem>>, %arg4: memref<8x256xbf16, #tpu.memory_space<vmem>>, %arg5: memref<32x256xbf16, #tpu.memory_space<vmem>>, %arg6: memref<128x256xbf16, #tpu.memory_space<vmem>>, %arg7: memref<1x256xf32, #tpu.memory_space<vmem>>, %arg8: memref<256x128xbf16, #tpu.memory_space<vmem>>, %arg9: memref<1x128xf32, #tpu.memory_space<vmem>>, %arg10: memref<8x8x128xf32, #tpu.memory_space<vmem>>, %arg11: memref<8x128xf32, #tpu.memory_space<vmem>>, %arg12: memref<8x128xf32, #tpu.memory_space<vmem>>, %arg13: memref<64x256xf32, #tpu.memory_space<vmem>>) attributes {dimension_semantics = [#tpu.dimension_semantics<arbitrary>], iteration_bounds = array<i64: 1>, scalar_prefetch = 0 : i64, scratch_operands = 2 : i64, tpu.core_type = #tpu.core_type<tc>, window_params = [{pipeline_mode = #tpu.pipeline_mode<synchronous>, transform_indices = @transform_0, window_bounds = array<i64: 8, 8>}, {transform_indices = @transform_1, window_bounds = array<i64: 64, 32>}, {pipeline_mode = #tpu.pipeline_mode<synchronous>, transform_indices = @transform_2, window_bounds = array<i64: 8, 128>}, {pipeline_mode = #tpu.pipeline_mode<synchronous>, transform_indices = @transform_3, window_bounds = array<i64: 8, 256>}, {pipeline_mode = #tpu.pipeline_mode<synchronous>, transform_indices = @transform_4, window_bounds = array<i64: 32, 256>}, {pipeline_mode = #tpu.pipeline_mode<synchronous>, transform_indices = @transform_5, window_bounds = array<i64: 128, 256>}, {pipeline_mode = #tpu.pipeline_mode<synchronous>, transform_indices = @transform_6, window_bounds = array<i64: 1, 256>}, {pipeline_mode = #tpu.pipeline_mode<synchronous>, transform_indices = @transform_7, window_bounds = array<i64: 256, 128>}, {pipeline_mode = #tpu.pipeline_mode<synchronous>, transform_indices = @transform_8, window_bounds = array<i64: 1, 128>}, {transform_indices = @transform_9, window_bounds = array<i64: 8, 8, 128>}, {pipeline_mode = #tpu.pipeline_mode<synchronous>, transform_indices = @transform_10, window_bounds = array<i64: 8, 128>}]} {
    %c0_i32 = arith.constant 0 : i32
    %0 = arith.cmpi eq, %arg0, %c0_i32 : i32
    %1 = arith.extui %0 : i1 to i32
    %c0_i32_0 = arith.constant 0 : i32
    %2 = arith.cmpi ne, %1, %c0_i32_0 : i32
    scf.if %2 {
      %c0_82 = arith.constant 0 : index
      %c0_83 = arith.constant 0 : index
      %156 = vector.load %arg3[%c0_82, %c0_83] : memref<8x128xf32, #tpu.memory_space<vmem>>, vector<8x128xf32>
      %c0_84 = arith.constant 0 : index
      %c0_85 = arith.constant 0 : index
      %157 = vector.load %arg12[%c0_84, %c0_85] : memref<8x128xf32, #tpu.memory_space<vmem>>, vector<8x128xf32>
      tpu.vector_store %arg12[%c0_84, %c0_85], %156 {strides = array<i32>} : memref<8x128xf32, #tpu.memory_space<vmem>>, vector<8x128xf32>,
    } else {
    }
    %c0 = arith.constant 0 : index
    %c0_1 = arith.constant 0 : index
    %3 = vector.load %arg1[%c0, %c0_1] : memref<8x8xbf16, #tpu.memory_space<vmem>>, vector<8x8xbf16>
    %c0_2 = arith.constant 0 : index
    %c0_3 = arith.constant 0 : index
    %4 = vector.load %arg4[%c0_2, %c0_3] : memref<8x256xbf16, #tpu.memory_space<vmem>>, vector<8x256xbf16>
    %cst = arith.constant dense<0.000000e+00> : vector<8x256xf32>
    %5 = tpu.matmul %3, %4, %cst {dimension_numbers = #tpu.dot_dimension_numbers<[1], [0], [0], [1], [0, 0, 1, 1], [], []>} : vector<8x8xbf16>, vector<8x256xbf16>, vector<8x256xf32> -> vector<8x256xf32>
    %c0_4 = arith.constant 0 : index
    %c0_5 = arith.constant 0 : index
    %6 = vector.load %arg7[%c0_4, %c0_5] : memref<1x256xf32, #tpu.memory_space<vmem>>, vector<1x256xf32>
    %7 = vector.broadcast %6 : vector<1x256xf32> to vector<8x256xf32>
    %8 = arith.addf %5, %7 : vector<8x256xf32>
    %c0_6 = arith.constant 0 : index
    %c0_7 = arith.constant 0 : index
    %9 = vector.load %arg2[%c0_6, %c0_7] : memref<64x32xbf16, #tpu.memory_space<vmem>>, vector<64x32xbf16>
    %c0_8 = arith.constant 0 : index
    %c0_9 = arith.constant 0 : index
    %10 = vector.load %arg5[%c0_8, %c0_9] : memref<32x256xbf16, #tpu.memory_space<vmem>>, vector<32x256xbf16>
    %cst_10 = arith.constant dense<0.000000e+00> : vector<64x256xf32>
    %11 = tpu.matmul %9, %10, %cst_10 {dimension_numbers = #tpu.dot_dimension_numbers<[1], [0], [0], [1], [0, 0, 1, 1], [], []>} : vector<64x32xbf16>, vector<32x256xbf16>, vector<64x256xf32> -> vector<64x256xf32>
    %c0_11 = arith.constant 0 : index
    %c0_12 = arith.constant 0 : index
    %12 = vector.load %arg13[%c0_11, %c0_12] : memref<64x256xf32, #tpu.memory_space<vmem>>, vector<64x256xf32>
    tpu.vector_store %arg13[%c0_11, %c0_12], %11 {strides = array<i32>} : memref<64x256xf32, #tpu.memory_space<vmem>>, vector<64x256xf32>,
    %c0_13 = arith.constant 0 : index
    %c0_14 = arith.constant 0 : index
    %13 = vector.load %arg6[%c0_13, %c0_14] : memref<128x256xbf16, #tpu.memory_space<vmem>>, vector<128x256xbf16>
    %c0_15 = arith.constant 0 : index
    %c0_16 = arith.constant 0 : index
    %14 = vector.load %arg8[%c0_15, %c0_16] : memref<256x128xbf16, #tpu.memory_space<vmem>>, vector<256x128xbf16>
    %c0_17 = arith.constant 0 : index
    %c0_18 = arith.constant 0 : index
    %15 = vector.load %arg12[%c0_17, %c0_18] : memref<8x128xf32, #tpu.memory_space<vmem>>, vector<8x128xf32>
    %c0_i32_19 = arith.constant 0 : i32
    %c8_i32 = arith.constant 8 : i32
    %16 = arith.muli %c0_i32_19, %c8_i32 : i32
    %17 = tpu.assume_multiple %16, 8 : i32
    %18 = arith.index_cast %17 : i32 to index
    %c0_20 = arith.constant 0 : index
    %19 = vector.load %arg13[%18, %c0_20] : memref<64x256xf32, #tpu.memory_space<vmem>>, vector<8x256xf32>
    %20 = arith.addf %19, %8 : vector<8x256xf32>
    %21 = arith.truncf %15 : vector<8x128xf32> to vector<8x128xbf16>
    %cst_21 = arith.constant dense<0.000000e+00> : vector<8x256xf32>
    %22 = tpu.matmul %21, %13, %cst_21 {dimension_numbers = #tpu.dot_dimension_numbers<[1], [0], [0], [1], [0, 0, 1, 1], [], []>} : vector<8x128xbf16>, vector<128x256xbf16>, vector<8x256xf32> -> vector<8x256xf32>
    %23 = arith.addf %20, %22 : vector<8x256xf32>
    %24 = arith.truncf %23 : vector<8x256xf32> to vector<8x256xbf16>
    %cst_22 = arith.constant dense<0.000000e+00> : vector<8x128xf32>
    %25 = tpu.matmul %24, %14, %cst_22 {dimension_numbers = #tpu.dot_dimension_numbers<[1], [0], [0], [1], [0, 0, 1, 1], [], []>} : vector<8x256xbf16>, vector<256x128xbf16>, vector<8x128xf32> -> vector<8x128xf32>
    %26 = arith.index_cast %c0_i32_19 : i32 to index
    %c0_23 = arith.constant 0 : index
    %c0_24 = arith.constant 0 : index
    %27 = vector.load %arg10[%26, %c0_23, %c0_24] : memref<8x8x128xf32, #tpu.memory_space<vmem>>, vector<1x8x128xf32>
    %28 = vector.shape_cast %27 : vector<1x8x128xf32> to vector<8x128xf32>
    %29 = vector.shape_cast %25 : vector<8x128xf32> to vector<1x8x128xf32>
    tpu.vector_store %arg10[%26, %c0_23, %c0_24], %29 {strides = array<i32>} : memref<8x8x128xf32, #tpu.memory_space<vmem>>, vector<1x8x128xf32>,
    %30 = vector.extract_strided_slice %23 {offsets = [0, 0], sizes = [8, 128], strides = [1, 1]} : vector<8x256xf32> to vector<8x128xf32>
    %c1_i32 = arith.constant 1 : i32
    %c8_i32_25 = arith.constant 8 : i32
    %31 = arith.muli %c1_i32, %c8_i32_25 : i32
    %32 = tpu.assume_multiple %31, 8 : i32
    %33 = arith.index_cast %32 : i32 to index
    %c0_26 = arith.constant 0 : index
    %34 = vector.load %arg13[%33, %c0_26] : memref<64x256xf32, #tpu.memory_space<vmem>>, vector<8x256xf32>
    %35 = arith.addf %34, %8 : vector<8x256xf32>
    %36 = arith.truncf %30 : vector<8x128xf32> to vector<8x128xbf16>
    %cst_27 = arith.constant dense<0.000000e+00> : vector<8x256xf32>
    %37 = tpu.matmul %36, %13, %cst_27 {dimension_numbers = #tpu.dot_dimension_numbers<[1], [0], [0], [1], [0, 0, 1, 1], [], []>} : vector<8x128xbf16>, vector<128x256xbf16>, vector<8x256xf32> -> vector<8x256xf32>
    %38 = arith.addf %35, %37 : vector<8x256xf32>
    %39 = arith.truncf %38 : vector<8x256xf32> to vector<8x256xbf16>
    %cst_28 = arith.constant dense<0.000000e+00> : vector<8x128xf32>
    %40 = tpu.matmul %39, %14, %cst_28 {dimension_numbers = #tpu.dot_dimension_numbers<[1], [0], [0], [1], [0, 0, 1, 1], [], []>} : vector<8x256xbf16>, vector<256x128xbf16>, vector<8x128xf32> -> vector<8x128xf32>
    %41 = arith.index_cast %c1_i32 : i32 to index
    %c0_29 = arith.constant 0 : index
    %c0_30 = arith.constant 0 : index
    %42 = vector.load %arg10[%41, %c0_29, %c0_30] : memref<8x8x128xf32, #tpu.memory_space<vmem>>, vector<1x8x128xf32>
    %43 = vector.shape_cast %42 : vector<1x8x128xf32> to vector<8x128xf32>
    %44 = vector.shape_cast %40 : vector<8x128xf32> to vector<1x8x128xf32>
    tpu.vector_store %arg10[%41, %c0_29, %c0_30], %44 {strides = array<i32>} : memref<8x8x128xf32, #tpu.memory_space<vmem>>, vector<1x8x128xf32>,
    %45 = vector.extract_strided_slice %38 {offsets = [0, 0], sizes = [8, 128], strides = [1, 1]} : vector<8x256xf32> to vector<8x128xf32>
    %c2_i32 = arith.constant 2 : i32
    %c8_i32_31 = arith.constant 8 : i32
    %46 = arith.muli %c2_i32, %c8_i32_31 : i32
    %47 = tpu.assume_multiple %46, 8 : i32
    %48 = arith.index_cast %47 : i32 to index
    %c0_32 = arith.constant 0 : index
    %49 = vector.load %arg13[%48, %c0_32] : memref<64x256xf32, #tpu.memory_space<vmem>>, vector<8x256xf32>
    %50 = arith.addf %49, %8 : vector<8x256xf32>
    %51 = arith.truncf %45 : vector<8x128xf32> to vector<8x128xbf16>
    %cst_33 = arith.constant dense<0.000000e+00> : vector<8x256xf32>
    %52 = tpu.matmul %51, %13, %cst_33 {dimension_numbers = #tpu.dot_dimension_numbers<[1], [0], [0], [1], [0, 0, 1, 1], [], []>} : vector<8x128xbf16>, vector<128x256xbf16>, vector<8x256xf32> -> vector<8x256xf32>
    %53 = arith.addf %50, %52 : vector<8x256xf32>
    %54 = arith.truncf %53 : vector<8x256xf32> to vector<8x256xbf16>
    %cst_34 = arith.constant dense<0.000000e+00> : vector<8x128xf32>
    %55 = tpu.matmul %54, %14, %cst_34 {dimension_numbers = #tpu.dot_dimension_numbers<[1], [0], [0], [1], [0, 0, 1, 1], [], []>} : vector<8x256xbf16>, vector<256x128xbf16>, vector<8x128xf32> -> vector<8x128xf32>
    %56 = arith.index_cast %c2_i32 : i32 to index
    %c0_35 = arith.constant 0 : index
    %c0_36 = arith.constant 0 : index
    %57 = vector.load %arg10[%56, %c0_35, %c0_36] : memref<8x8x128xf32, #tpu.memory_space<vmem>>, vector<1x8x128xf32>
    %58 = vector.shape_cast %57 : vector<1x8x128xf32> to vector<8x128xf32>
    %59 = vector.shape_cast %55 : vector<8x128xf32> to vector<1x8x128xf32>
    tpu.vector_store %arg10[%56, %c0_35, %c0_36], %59 {strides = array<i32>} : memref<8x8x128xf32, #tpu.memory_space<vmem>>, vector<1x8x128xf32>,
    %60 = vector.extract_strided_slice %53 {offsets = [0, 0], sizes = [8, 128], strides = [1, 1]} : vector<8x256xf32> to vector<8x128xf32>
    %c3_i32 = arith.constant 3 : i32
    %c8_i32_37 = arith.constant 8 : i32
    %61 = arith.muli %c3_i32, %c8_i32_37 : i32
    %62 = tpu.assume_multiple %61, 8 : i32
    %63 = arith.index_cast %62 : i32 to index
    %c0_38 = arith.constant 0 : index
    %64 = vector.load %arg13[%63, %c0_38] : memref<64x256xf32, #tpu.memory_space<vmem>>, vector<8x256xf32>
    %65 = arith.addf %64, %8 : vector<8x256xf32>
    %66 = arith.truncf %60 : vector<8x128xf32> to vector<8x128xbf16>
    %cst_39 = arith.constant dense<0.000000e+00> : vector<8x256xf32>
    %67 = tpu.matmul %66, %13, %cst_39 {dimension_numbers = #tpu.dot_dimension_numbers<[1], [0], [0], [1], [0, 0, 1, 1], [], []>} : vector<8x128xbf16>, vector<128x256xbf16>, vector<8x256xf32> -> vector<8x256xf32>
    %68 = arith.addf %65, %67 : vector<8x256xf32>
    %69 = arith.truncf %68 : vector<8x256xf32> to vector<8x256xbf16>
    %cst_40 = arith.constant dense<0.000000e+00> : vector<8x128xf32>
    %70 = tpu.matmul %69, %14, %cst_40 {dimension_numbers = #tpu.dot_dimension_numbers<[1], [0], [0], [1], [0, 0, 1, 1], [], []>} : vector<8x256xbf16>, vector<256x128xbf16>, vector<8x128xf32> -> vector<8x128xf32>
    %71 = arith.index_cast %c3_i32 : i32 to index
    %c0_41 = arith.constant 0 : index
    %c0_42 = arith.constant 0 : index
    %72 = vector.load %arg10[%71, %c0_41, %c0_42] : memref<8x8x128xf32, #tpu.memory_space<vmem>>, vector<1x8x128xf32>
    %73 = vector.shape_cast %72 : vector<1x8x128xf32> to vector<8x128xf32>
    %74 = vector.shape_cast %70 : vector<8x128xf32> to vector<1x8x128xf32>
    tpu.vector_store %arg10[%71, %c0_41, %c0_42], %74 {strides = array<i32>} : memref<8x8x128xf32, #tpu.memory_space<vmem>>, vector<1x8x128xf32>,
    %75 = vector.extract_strided_slice %68 {offsets = [0, 0], sizes = [8, 128], strides = [1, 1]} : vector<8x256xf32> to vector<8x128xf32>
    %c4_i32 = arith.constant 4 : i32
    %c8_i32_43 = arith.constant 8 : i32
    %76 = arith.muli %c4_i32, %c8_i32_43 : i32
    %77 = tpu.assume_multiple %76, 8 : i32
    %78 = arith.index_cast %77 : i32 to index
    %c0_44 = arith.constant 0 : index
    %79 = vector.load %arg13[%78, %c0_44] : memref<64x256xf32, #tpu.memory_space<vmem>>, vector<8x256xf32>
    %80 = arith.addf %79, %8 : vector<8x256xf32>
    %81 = arith.truncf %75 : vector<8x128xf32> to vector<8x128xbf16>
    %cst_45 = arith.constant dense<0.000000e+00> : vector<8x256xf32>
    %82 = tpu.matmul %81, %13, %cst_45 {dimension_numbers = #tpu.dot_dimension_numbers<[1], [0], [0], [1], [0, 0, 1, 1], [], []>} : vector<8x128xbf16>, vector<128x256xbf16>, vector<8x256xf32> -> vector<8x256xf32>
    %83 = arith.addf %80, %82 : vector<8x256xf32>
    %84 = arith.truncf %83 : vector<8x256xf32> to vector<8x256xbf16>
    %cst_46 = arith.constant dense<0.000000e+00> : vector<8x128xf32>
    %85 = tpu.matmul %84, %14, %cst_46 {dimension_numbers = #tpu.dot_dimension_numbers<[1], [0], [0], [1], [0, 0, 1, 1], [], []>} : vector<8x256xbf16>, vector<256x128xbf16>, vector<8x128xf32> -> vector<8x128xf32>
    %86 = arith.index_cast %c4_i32 : i32 to index
    %c0_47 = arith.constant 0 : index
    %c0_48 = arith.constant 0 : index
    %87 = vector.load %arg10[%86, %c0_47, %c0_48] : memref<8x8x128xf32, #tpu.memory_space<vmem>>, vector<1x8x128xf32>
    %88 = vector.shape_cast %87 : vector<1x8x128xf32> to vector<8x128xf32>
    %89 = vector.shape_cast %85 : vector<8x128xf32> to vector<1x8x128xf32>
    tpu.vector_store %arg10[%86, %c0_47, %c0_48], %89 {strides = array<i32>} : memref<8x8x128xf32, #tpu.memory_space<vmem>>, vector<1x8x128xf32>,
    %90 = vector.extract_strided_slice %83 {offsets = [0, 0], sizes = [8, 128], strides = [1, 1]} : vector<8x256xf32> to vector<8x128xf32>
    %c5_i32 = arith.constant 5 : i32
    %c8_i32_49 = arith.constant 8 : i32
    %91 = arith.muli %c5_i32, %c8_i32_49 : i32
    %92 = tpu.assume_multiple %91, 8 : i32
    %93 = arith.index_cast %92 : i32 to index
    %c0_50 = arith.constant 0 : index
    %94 = vector.load %arg13[%93, %c0_50] : memref<64x256xf32, #tpu.memory_space<vmem>>, vector<8x256xf32>
    %95 = arith.addf %94, %8 : vector<8x256xf32>
    %96 = arith.truncf %90 : vector<8x128xf32> to vector<8x128xbf16>
    %cst_51 = arith.constant dense<0.000000e+00> : vector<8x256xf32>
    %97 = tpu.matmul %96, %13, %cst_51 {dimension_numbers = #tpu.dot_dimension_numbers<[1], [0], [0], [1], [0, 0, 1, 1], [], []>} : vector<8x128xbf16>, vector<128x256xbf16>, vector<8x256xf32> -> vector<8x256xf32>
    %98 = arith.addf %95, %97 : vector<8x256xf32>
    %99 = arith.truncf %98 : vector<8x256xf32> to vector<8x256xbf16>
    %cst_52 = arith.constant dense<0.000000e+00> : vector<8x128xf32>
    %100 = tpu.matmul %99, %14, %cst_52 {dimension_numbers = #tpu.dot_dimension_numbers<[1], [0], [0], [1], [0, 0, 1, 1], [], []>} : vector<8x256xbf16>, vector<256x128xbf16>, vector<8x128xf32> -> vector<8x128xf32>
    %101 = arith.index_cast %c5_i32 : i32 to index
    %c0_53 = arith.constant 0 : index
    %c0_54 = arith.constant 0 : index
    %102 = vector.load %arg10[%101, %c0_53, %c0_54] : memref<8x8x128xf32, #tpu.memory_space<vmem>>, vector<1x8x128xf32>
    %103 = vector.shape_cast %102 : vector<1x8x128xf32> to vector<8x128xf32>
    %104 = vector.shape_cast %100 : vector<8x128xf32> to vector<1x8x128xf32>
    tpu.vector_store %arg10[%101, %c0_53, %c0_54], %104 {strides = array<i32>} : memref<8x8x128xf32, #tpu.memory_space<vmem>>, vector<1x8x128xf32>,
    %105 = vector.extract_strided_slice %98 {offsets = [0, 0], sizes = [8, 128], strides = [1, 1]} : vector<8x256xf32> to vector<8x128xf32>
    %c6_i32 = arith.constant 6 : i32
    %c8_i32_55 = arith.constant 8 : i32
    %106 = arith.muli %c6_i32, %c8_i32_55 : i32
    %107 = tpu.assume_multiple %106, 8 : i32
    %108 = arith.index_cast %107 : i32 to index
    %c0_56 = arith.constant 0 : index
    %109 = vector.load %arg13[%108, %c0_56] : memref<64x256xf32, #tpu.memory_space<vmem>>, vector<8x256xf32>
    %110 = arith.addf %109, %8 : vector<8x256xf32>
    %111 = arith.truncf %105 : vector<8x128xf32> to vector<8x128xbf16>
    %cst_57 = arith.constant dense<0.000000e+00> : vector<8x256xf32>
    %112 = tpu.matmul %111, %13, %cst_57 {dimension_numbers = #tpu.dot_dimension_numbers<[1], [0], [0], [1], [0, 0, 1, 1], [], []>} : vector<8x128xbf16>, vector<128x256xbf16>, vector<8x256xf32> -> vector<8x256xf32>
    %113 = arith.addf %110, %112 : vector<8x256xf32>
    %114 = arith.truncf %113 : vector<8x256xf32> to vector<8x256xbf16>
    %cst_58 = arith.constant dense<0.000000e+00> : vector<8x128xf32>
    %115 = tpu.matmul %114, %14, %cst_58 {dimension_numbers = #tpu.dot_dimension_numbers<[1], [0], [0], [1], [0, 0, 1, 1], [], []>} : vector<8x256xbf16>, vector<256x128xbf16>, vector<8x128xf32> -> vector<8x128xf32>
    %116 = arith.index_cast %c6_i32 : i32 to index
    %c0_59 = arith.constant 0 : index
    %c0_60 = arith.constant 0 : index
    %117 = vector.load %arg10[%116, %c0_59, %c0_60] : memref<8x8x128xf32, #tpu.memory_space<vmem>>, vector<1x8x128xf32>
    %118 = vector.shape_cast %117 : vector<1x8x128xf32> to vector<8x128xf32>
    %119 = vector.shape_cast %115 : vector<8x128xf32> to vector<1x8x128xf32>
    tpu.vector_store %arg10[%116, %c0_59, %c0_60], %119 {strides = array<i32>} : memref<8x8x128xf32, #tpu.memory_space<vmem>>, vector<1x8x128xf32>,
    %120 = vector.extract_strided_slice %113 {offsets = [0, 0], sizes = [8, 128], strides = [1, 1]} : vector<8x256xf32> to vector<8x128xf32>
    %c7_i32 = arith.constant 7 : i32
    %c8_i32_61 = arith.constant 8 : i32
    %121 = arith.muli %c7_i32, %c8_i32_61 : i32
    %122 = tpu.assume_multiple %121, 8 : i32
    %123 = arith.index_cast %122 : i32 to index
    %c0_62 = arith.constant 0 : index
    %124 = vector.load %arg13[%123, %c0_62] : memref<64x256xf32, #tpu.memory_space<vmem>>, vector<8x256xf32>
    %125 = arith.addf %124, %8 : vector<8x256xf32>
    %126 = arith.truncf %120 : vector<8x128xf32> to vector<8x128xbf16>
    %cst_63 = arith.constant dense<0.000000e+00> : vector<8x256xf32>
    %127 = tpu.matmul %126, %13, %cst_63 {dimension_numbers = #tpu.dot_dimension_numbers<[1], [0], [0], [1], [0, 0, 1, 1], [], []>} : vector<8x128xbf16>, vector<128x256xbf16>, vector<8x256xf32> -> vector<8x256xf32>
    %128 = arith.addf %125, %127 : vector<8x256xf32>
    %129 = arith.truncf %128 : vector<8x256xf32> to vector<8x256xbf16>
    %cst_64 = arith.constant dense<0.000000e+00> : vector<8x128xf32>
    %130 = tpu.matmul %129, %14, %cst_64 {dimension_numbers = #tpu.dot_dimension_numbers<[1], [0], [0], [1], [0, 0, 1, 1], [], []>} : vector<8x256xbf16>, vector<256x128xbf16>, vector<8x128xf32> -> vector<8x128xf32>
    %131 = arith.index_cast %c7_i32 : i32 to index
    %c0_65 = arith.constant 0 : index
    %c0_66 = arith.constant 0 : index
    %132 = vector.load %arg10[%131, %c0_65, %c0_66] : memref<8x8x128xf32, #tpu.memory_space<vmem>>, vector<1x8x128xf32>
    %133 = vector.shape_cast %132 : vector<1x8x128xf32> to vector<8x128xf32>
    %134 = vector.shape_cast %130 : vector<8x128xf32> to vector<1x8x128xf32>
    tpu.vector_store %arg10[%131, %c0_65, %c0_66], %134 {strides = array<i32>} : memref<8x8x128xf32, #tpu.memory_space<vmem>>, vector<1x8x128xf32>,
    %135 = vector.extract_strided_slice %128 {offsets = [0, 0], sizes = [8, 128], strides = [1, 1]} : vector<8x256xf32> to vector<8x128xf32>
    %c8_i32_67 = arith.constant 8 : i32
    %c0_68 = arith.constant 0 : index
    %c0_69 = arith.constant 0 : index
    %136 = vector.load %arg12[%c0_68, %c0_69] : memref<8x128xf32, #tpu.memory_space<vmem>>, vector<8x128xf32>
    tpu.vector_store %arg12[%c0_68, %c0_69], %135 {strides = array<i32>} : memref<8x128xf32, #tpu.memory_space<vmem>>, vector<8x128xf32>,
    %c0_70 = arith.constant 0 : index
    %c0_71 = arith.constant 0 : index
    %c0_72 = arith.constant 0 : index
    %137 = vector.load %arg10[%c0_70, %c0_71, %c0_72] : memref<8x8x128xf32, #tpu.memory_space<vmem>>, vector<8x8x128xf32>
    %c0_73 = arith.constant 0 : index
    %c0_74 = arith.constant 0 : index
    %138 = vector.load %arg9[%c0_73, %c0_74] : memref<1x128xf32, #tpu.memory_space<vmem>>, vector<1x128xf32>
    %139 = vector.shape_cast %138 : vector<1x128xf32> to vector<1x1x128xf32>
    %140 = vector.broadcast %139 : vector<1x1x128xf32> to vector<8x8x128xf32>
    %141 = arith.addf %137, %140 : vector<8x8x128xf32>
    %cst_75 = arith.constant dense<0xFF800000> : vector<8x8xf32>
    %142 = vector.multi_reduction <maximumf>, %141, %cst_75 [2] : vector<8x8x128xf32> to vector<8x8xf32>
    %143 = vector.shape_cast %142 : vector<8x8xf32> to vector<8x8x1xf32>
    %144 = vector.broadcast %143 : vector<8x8x1xf32> to vector<8x8x128xf32>
    %145 = arith.subf %141, %144 : vector<8x8x128xf32>
    %146 = math.exp %145 : vector<8x8x128xf32>
    %cst_76 = arith.constant dense<0.000000e+00> : vector<8x8xf32>
    %147 = vector.multi_reduction <add>, %146, %cst_76 [2] : vector<8x8x128xf32> to vector<8x8xf32>
    %148 = vector.shape_cast %147 : vector<8x8xf32> to vector<8x8x1xf32>
    %149 = math.log %148 : vector<8x8x1xf32>
    %150 = vector.broadcast %149 : vector<8x8x1xf32> to vector<8x8x128xf32>
    %151 = arith.subf %145, %150 : vector<8x8x128xf32>
    %c0_77 = arith.constant 0 : index
    %c0_78 = arith.constant 0 : index
    %c0_79 = arith.constant 0 : index
    %152 = vector.load %arg10[%c0_77, %c0_78, %c0_79] : memref<8x8x128xf32, #tpu.memory_space<vmem>>, vector<8x8x128xf32>
    tpu.vector_store %arg10[%c0_77, %c0_78, %c0_79], %151 {strides = array<i32>} : memref<8x8x128xf32, #tpu.memory_space<vmem>>, vector<8x8x128xf32>,
    %c0_i32_80 = arith.constant 0 : i32
    %153 = arith.cmpi eq, %arg0, %c0_i32_80 : i32
    %154 = arith.extui %153 : i1 to i32
    %c0_i32_81 = arith.constant 0 : i32
    %155 = arith.cmpi ne, %154, %c0_i32_81 : i32
    scf.if %155 {
      %c0_82 = arith.constant 0 : index
      %c0_83 = arith.constant 0 : index
      %156 = vector.load %arg11[%c0_82, %c0_83] : memref<8x128xf32, #tpu.memory_space<vmem>>, vector<8x128xf32>
      tpu.vector_store %arg11[%c0_82, %c0_83], %135 {strides = array<i32>} : memref<8x128xf32, #tpu.memory_space<vmem>>, vector<8x128xf32>,
    } else {
    }
    return
  }
  func.func @transform_0(%arg0: i32) -> (i32, i32) {
    %c0_i32 = arith.constant 0 : i32
    %c0_i32_0 = arith.constant 0 : i32
    %c0_i32_1 = arith.constant 0 : i32
    return %c0_i32, %c0_i32_0 : i32, i32
  }
  func.func @transform_1(%arg0: i32) -> (i32, i32) {
    %c0_i32 = arith.constant 0 : i32
    %c0_i32_0 = arith.constant 0 : i32
    return %arg0, %c0_i32 : i32, i32
  }
  func.func @transform_2(%arg0: i32) -> (i32, i32) {
    %c0_i32 = arith.constant 0 : i32
    %c0_i32_0 = arith.constant 0 : i32
    %c0_i32_1 = arith.constant 0 : i32
    return %c0_i32, %c0_i32_0 : i32, i32
  }
  func.func @transform_3(%arg0: i32) -> (i32, i32) {
    %c0_i32 = arith.constant 0 : i32
    %c0_i32_0 = arith.constant 0 : i32
    %c0_i32_1 = arith.constant 0 : i32
    return %c0_i32, %c0_i32_0 : i32, i32
  }
  func.func @transform_4(%arg0: i32) -> (i32, i32) {
    %c0_i32 = arith.constant 0 : i32
    %c0_i32_0 = arith.constant 0 : i32
    %c0_i32_1 = arith.constant 0 : i32
    return %c0_i32, %c0_i32_0 : i32, i32
  }
  func.func @transform_5(%arg0: i32) -> (i32, i32) {
    %c0_i32 = arith.constant 0 : i32
    %c0_i32_0 = arith.constant 0 : i32
    %c0_i32_1 = arith.constant 0 : i32
    return %c0_i32, %c0_i32_0 : i32, i32
  }
  func.func @transform_6(%arg0: i32) -> (i32, i32) {
    %c0_i32 = arith.constant 0 : i32
    %c0_i32_0 = arith.constant 0 : i32
    %c0_i32_1 = arith.constant 0 : i32
    return %c0_i32, %c0_i32_0 : i32, i32
  }
  func.func @transform_7(%arg0: i32) -> (i32, i32) {
    %c0_i32 = arith.constant 0 : i32
    %c0_i32_0 = arith.constant 0 : i32
    %c0_i32_1 = arith.constant 0 : i32
    return %c0_i32, %c0_i32_0 : i32, i32
  }
  func.func @transform_8(%arg0: i32) -> (i32, i32) {
    %c0_i32 = arith.constant 0 : i32
    %c0_i32_0 = arith.constant 0 : i32
    %c0_i32_1 = arith.constant 0 : i32
    return %c0_i32, %c0_i32_0 : i32, i32
  }
  func.func @transform_9(%arg0: i32) -> (i32, i32, i32) {
    %c0_i32 = arith.constant 0 : i32
    %c0_i32_0 = arith.constant 0 : i32
    %c0_i32_1 = arith.constant 0 : i32
    return %arg0, %c0_i32, %c0_i32_0 : i32, i32, i32
  }
  func.func @transform_10(%arg0: i32) -> (i32, i32) {
    %c0_i32 = arith.constant 0 : i32
    %c0_i32_0 = arith.constant 0 : i32
    %c0_i32_1 = arith.constant 0 : i32
    return %c0_i32, %c0_i32_0 : i32, i32
  }
}

</mosaic_0001>

<llo_original>
// kernel: tpu_custom_call.1
$region0: #{tpu_custom_call.1}
  #allocation0 [shape = 'u32[]', space=smem, size = 0x4, offset = 0x4, fixed_abs, tag = 'smem constant byte address 0x4 - core index']
  #allocation1 [shape = 'u32[144,128]{1,0:T(1,128)}', space=vmem, size = 0x12000, scoped, tag = 'internal scratch']
  #allocation2 [shape = 'f32[8,128]{1,0:T(8,128)}', space=vmem, size = 0x1000, scoped, tag = 'scratch operand']
  #allocation3 [shape = 'f32[64,256]{1,0:T(8,128)}', space=vmem, size = 0x10000, scoped, tag = 'scratch operand']
  %s0 = inlined_call_operand.vmem [shape: bf16[8,8], index: 0, kind: input, shape index: {}]
  %s1 = inlined_call_operand.vmem [shape: bf16[64,32], index: 1, kind: input, shape index: {}]
  %s2 = inlined_call_operand.vmem [shape: f32[8,128], index: 2, kind: input, shape index: {}]
  %s3 = inlined_call_operand.vmem [shape: bf16[8,256], index: 3, kind: input, shape index: {}]
  %s4 = inlined_call_operand.vmem [shape: bf16[32,256], index: 4, kind: input, shape index: {}]
  %s5 = inlined_call_operand.hbm [shape: bf16[128,256], index: 5, kind: input, shape index: {}]
  %s6 = inlined_call_operand.vmem [shape: f32[1,256], index: 6, kind: input, shape index: {}]
  %s7 = inlined_call_operand.hbm [shape: bf16[256,128], index: 7, kind: input, shape index: {}]
  %s8 = inlined_call_operand.vmem [shape: f32[1,128], index: 8, kind: input, shape index: {}]
  %s9 = inlined_call_operand.hbm [shape: f32[8,8,128], index: 9, kind: output, shape index: {0}]
  %s10 = inlined_call_operand.hbm [shape: f32[8,128], index: 10, kind: output, shape index: {1}]
  %11 = xla_tuple %s9, %s10
  %s12 = sld [smem:[#allocation0]]
  $region70: #{tpu_custom_call.1} parent=0
    _
  %s14 = ssub.s32 1, %s12
  %s15 = scalar_select 0, %s14, %s12
  $region1: #{tpu_custom_call.1} parent=0
    #allocation4 [shape = 'u8[65536]{0}', space=vmem, size = 0x10000, scoped, tag = 'input window, operand 5, single buffered']
    #allocation5 [shape = 's32[1]{0}', space=sflag, size = 0x4, scoped, tag = 'scoped memory for tpu_custom_call.1']
    #allocation6 [shape = 's32[1]{0}', space=sflag, size = 0x4, scoped, tag = 'scoped memory for tpu_custom_call.1']
    #allocation7 [shape = 'u8[65536]{0}', space=vmem, size = 0x10000, scoped, tag = 'input window, operand 7, single buffered']
    #allocation8 [shape = 's32[1]{0}', space=sflag, size = 0x4, scoped, tag = 'scoped memory for tpu_custom_call.1']
    #allocation9 [shape = 'u8[32768]{0}', space=vmem, size = 0x8000, scoped, tag = 'output window, operand 0, single buffered']
    #allocation10 [shape = 'u8[4096]{0}', space=vmem, size = 0x1000, scoped, tag = 'output window, operand 1, single buffered']
    #allocation11 [shape = 's32[1]{0}', space=sflag, size = 0x4, scoped, tag = 'scoped memory for tpu_custom_call.1']
    %16 = vsyncpa [#allocation5], 0
    %17 = vsyncpa [#allocation8], 0
    %18 = vsyncpa [#allocation6], 0
    %19 = vsyncpa [#allocation11], 0
    // Predicated region
    $region2: #{tpu_custom_call.1} parent=1 // pred_check
      _
    $region3: #{tpu_custom_call.1} parent=1 // pred_check_branch
      %21 = sbr.rel (0) target = $region5
    $region4: #{tpu_custom_call.1} parent=1 // pred_region
      _
    $region5: #{tpu_custom_call.1} parent=1 // pred_fallthru
      _
    // Predicated region
    $region6: #{tpu_custom_call.1} parent=1 // pred_check
      _
    $region7: #{tpu_custom_call.1} parent=1 // pred_check_branch
      %23 = sbr.rel (0) target = $region9
    $region8: #{tpu_custom_call.1} parent=1 // pred_region
      _
    $region9: #{tpu_custom_call.1} parent=1 // pred_fallthru
      _
    // Predicated region
    $region10: #{tpu_custom_call.1} parent=1 // pred_check
      _
    $region11: #{tpu_custom_call.1} parent=1 // pred_check_branch
      %25 = sbr.rel (0) target = $region13
    $region12: #{tpu_custom_call.1} parent=1 // pred_region
      _
    $region13: #{tpu_custom_call.1} parent=1 // pred_fallthru
      _
    // Predicated region
    $region14: #{tpu_custom_call.1} parent=1 // pred_check
      _
    $region15: #{tpu_custom_call.1} parent=1 // pred_check_branch
      %27 = sbr.rel (0) target = $region17
    $region16: #{tpu_custom_call.1} parent=1 // pred_region
      _
    $region17: #{tpu_custom_call.1} parent=1 // pred_fallthru
      _
    // Predicated region
    $region18: #{tpu_custom_call.1} parent=1 // pred_check
      _
    $region19: #{tpu_custom_call.1} parent=1 // pred_check_branch
      %29 = sbr.rel (0) target = $region21
    $region20: #{tpu_custom_call.1} parent=1 // pred_region
      _
    $region21: #{tpu_custom_call.1} parent=1 // pred_fallthru
      _
    // Predicated region
    $region22: #{tpu_custom_call.1} parent=1 // pred_check
      _
    $region23: #{tpu_custom_call.1} parent=1 // pred_check_branch
      %31 = sbr.rel (0) target = $region25
    $region24: #{tpu_custom_call.1} parent=1 // pred_region
      %s33 = ssub.s32 2048, 2048
      %34 = vsyncadd [#allocation5], %s33
      %s35 = sshll.u32 [#allocation4], 4
      %s36 = int_to_ptr.vmem [resolvable:$true] %s35
      %41 = dma.hbm_to_vmem [thread:$0]  %s5, 2048, %s36, [#allocation5], 128, 128, 8
    $region25: #{tpu_custom_call.1} parent=1 // pred_fallthru
      _
    // Predicated region
    $region26: #{tpu_custom_call.1} parent=1 // pred_check
      _
    $region27: #{tpu_custom_call.1} parent=1 // pred_check_branch
      %43 = sbr.rel (0) target = $region29
    $region28: #{tpu_custom_call.1} parent=1 // pred_region
      _
    $region29: #{tpu_custom_call.1} parent=1 // pred_fallthru
      _
    // Predicated region
    $region30: #{tpu_custom_call.1} parent=1 // pred_check
      _
    $region31: #{tpu_custom_call.1} parent=1 // pred_check_branch
      %45 = sbr.rel (0) target = $region33
    $region32: #{tpu_custom_call.1} parent=1 // pred_region
      %s47 = ssub.s32 2048, 2048
      %48 = vsyncadd [#allocation8], %s47
      %s49 = sshll.u32 [#allocation7], 4
      %s50 = int_to_ptr.vmem [resolvable:$true] %s49
      %55 = dma.hbm_to_vmem [thread:$0]  %s7, 2048, %s50, [#allocation8], 64, 64, 4
    $region33: #{tpu_custom_call.1} parent=1 // pred_fallthru
      _
    // Predicated region
    $region34: #{tpu_custom_call.1} parent=1 // pred_check
      _
    $region35: #{tpu_custom_call.1} parent=1 // pred_check_branch
      %57 = sbr.rel (0) target = $region37
    $region36: #{tpu_custom_call.1} parent=1 // pred_region
      _
    $region37: #{tpu_custom_call.1} parent=1 // pred_fallthru
      _
    // Predicated region
    $region38: #{tpu_custom_call.1} parent=1 // pred_check
      _
    $region39: #{tpu_custom_call.1} parent=1 // pred_check_branch
      %59 = sbr.rel (0) target = $region41
    $region40: #{tpu_custom_call.1} parent=1 // pred_region
      %60 = dma.done [#allocation5], 2048
    $region41: #{tpu_custom_call.1} parent=1 // pred_fallthru
      _
    // Predicated region
    $region42: #{tpu_custom_call.1} parent=1 // pred_check
      _
    $region43: #{tpu_custom_call.1} parent=1 // pred_check_branch
      %62 = sbr.rel (0) target = $region45
    $region44: #{tpu_custom_call.1} parent=1 // pred_region
      %63 = dma.done [#allocation8], 2048
    $region45: #{tpu_custom_call.1} parent=1 // pred_fallthru
      _
    %p65 = scmp.eq.s32.totalorder 0, 0
    // Predicated region
    $region46: #{tpu_custom_call.1} parent=1 // pred_check
      %p66 = pneg %p65
    $region47: #{tpu_custom_call.1} parent=1 // pred_check_branch
      %68 = sbr.rel (%p66) target = $region49
    $region48: #{tpu_custom_call.1} parent=1 // pred_region
      %v69 = vld [vmem:[%s2] sm:$0xff]
      %70 = vst [vmem:[#allocation2] sm:$0xff] %v69
    $region49: #{tpu_custom_call.1} parent=1 // pred_fallthru
      _
    %v71 = vld [vmem:[%s0] sm:$0xf]
    %v72 = vld [vmem:[%s3] sm:$0xff]
    %v73 = vld [vmem:[%s6] sm:$0x3]
    %v75 = vlaneseq
    %v76 = vshrl.u32 %v75, 7
    %v77 = vsub.s32 0, %v76
    %v78 = vrot.slane %v73, %v77
    %v79 = vlaneseq
    %v80 = vshrl.u32 %v79, 7
    %v81 = vsub.s32 1, %v80
    %v82 = vrot.slane %v73, %v81
    %v86 = vunpack.c.l.b16 %v72
    %v87 = vunpack.c.h.b16 %v72
    %v88 = vpack.c.b16 %v86, %v86
    %v89 = vpack.c.b16 %v87, %v87
    %vm90 = vcmask 64512
    %v92 = vsel %vm90, %v71, 0
    %vm94 = vcmask 1043456
    %v96 = vsel %vm94, %v88, 0
    %v99 = vsel %vm94, %v89, 0
    %101 = vmatprep.subr.bf16.mxu0 0
    %102 = vmatpush1.bf16.msra.mxu0 0
    %103 = vmatprep.subr.bf16.mxu0 0
    %104 = vmatpush1.bf16.msra.mxu0 0
    %105 = vmatprep.subr.bf16.mxu0 0
    %106 = vmatpush1.bf16.msra.mxu0 0
    %107 = vmatprep.subr.bf16.mxu0 0
    %108 = vmatpush1.bf16.msra.mxu0 0
    %109 = vmatprep.subr.bf16.mxu0 0
    %110 = vmatpush1.bf16.msra.mxu0 0
    %111 = vmatprep.subr.bf16.mxu0 0
    %112 = vmatpush1.bf16.msra.mxu0 0
    %113 = vmatprep.subr.bf16.mxu0 0
    %114 = vmatpush1.bf16.msra.mxu0 0
    %115 = vmatprep.subr.bf16.mxu0 %v99
    %116 = vmatpush1.bf16.msra.mxu0 %v96
    %117 = vmatprep.subr.bf16.mxu0 0
    %118 = vmatpush2.bf16.msra.mxu0 0
    %119 = vmatprep.subr.bf16.mxu0 0
    %120 = vmatpush2.bf16.msra.mxu0 0
    %121 = vmatprep.subr.bf16.mxu0 0
    %122 = vmatpush2.bf16.msra.mxu0 0
    %123 = vmatprep.subr.bf16.mxu0 0
    %124 = vmatpush2.bf16.msra.mxu0 0
    %125 = vmatprep.subr.bf16.mxu0 0
    %126 = vmatpush2.bf16.msra.mxu0 0
    %127 = vmatprep.subr.bf16.mxu0 0
    %128 = vmatpush2.bf16.msra.mxu0 0
    %129 = vmatprep.subr.bf16.mxu0 0
    %130 = vmatpush2.bf16.msra.mxu0 0
    %131 = vmatprep.subr.bf16.mxu0 0
    %132 = vmatpush2.bf16.msra.mxu0 0
    %133 = vmatprep.mubr.bf16.mxu0 0
    %134 = vmatmul.mubr.bf16.gmra.mxu0 %v92
    %v135 = vpop.f32.mrf.mxu0
    %v136 = vadd.f32 %v78, %v135
    %v137 = vpop.f32.mrf.mxu0
    %v138 = vadd.f32 %v82, %v137
    %v139 = vpop.f32.mrf.mxu0
    %v140 = vpop.f32.mrf.mxu0
    %141 = vdwg.mxu0
    %v142 = vld [vmem:[%s1] sm:$0xf]
    %v143 = vld [vmem:[%s1 + $0x4] sm:$0xf]
    %v144 = vld [vmem:[%s1 + $0x8] sm:$0xf]
    %v145 = vld [vmem:[%s1 + $0xc] sm:$0xf]
    %v146 = vld [vmem:[%s1 + $0x10] sm:$0xf]
    %v147 = vld [vmem:[%s1 + $0x14] sm:$0xf]
    %v148 = vld [vmem:[%s1 + $0x18] sm:$0xf]
    %v149 = vld [vmem:[%s1 + $0x1c] sm:$0xf]
    %v150 = vld [vmem:[%s4] sm:$0xff]
    %v151 = vld [vmem:[%s4 + $0x8] sm:$0xff]
    %v152 = vld [vmem:[%s4 + $0x10] sm:$0xff]
    %v153 = vld [vmem:[%s4 + $0x18] sm:$0xff]
    %v162 = vunpack.c.l.b16 %v142
    %v163 = vunpack.c.l.b16 %v143
    %v164 = vunpack.c.l.b16 %v144
    %v165 = vunpack.c.l.b16 %v145
    %v166 = vunpack.c.l.b16 %v146
    %v167 = vunpack.c.l.b16 %v147
    %v168 = vunpack.c.l.b16 %v148
    %v169 = vunpack.c.l.b16 %v149
    %v170 = vpack.c.b16 %v163, %v162
    %v171 = vpack.c.b16 %v165, %v164
    %v172 = vpack.c.b16 %v167, %v166
    %v173 = vpack.c.b16 %v169, %v168
    %v178 = vunpack.c.l.b16 %v150
    %v179 = vunpack.c.h.b16 %v150
    %v180 = vunpack.c.l.b16 %v151
    %v181 = vunpack.c.h.b16 %v151
    %v182 = vunpack.c.l.b16 %v152
    %v183 = vunpack.c.h.b16 %v152
    %v184 = vunpack.c.l.b16 %v153
    %v185 = vunpack.c.h.b16 %v153
    %v186 = vpack.c.b16 %v180, %v178
    %v187 = vpack.c.b16 %v181, %v179
    %v188 = vpack.c.b16 %v184, %v182
    %v189 = vpack.c.b16 %v185, %v183
    %vm194 = vcmask 261120
    %v196 = vsel %vm194, %v170, 0
    %v199 = vsel %vm194, %v171, 0
    %v202 = vsel %vm194, %v172, 0
    %v205 = vsel %vm194, %v173, 0
    %207 = vmatprep.subr.bf16.mxu0 0
    %208 = vmatpush1.bf16.msra.mxu0 0
    %209 = vmatprep.subr.bf16.mxu0 0
    %210 = vmatpush1.bf16.msra.mxu0 0
    %211 = vmatprep.subr.bf16.mxu0 0
    %212 = vmatpush1.bf16.msra.mxu0 0
    %213 = vmatprep.subr.bf16.mxu0 0
    %214 = vmatpush1.bf16.msra.mxu0 0
    %215 = vmatprep.subr.bf16.mxu0 0
    %216 = vmatpush1.bf16.msra.mxu0 0
    %217 = vmatprep.subr.bf16.mxu0 0
    %218 = vmatpush1.bf16.msra.mxu0 0
    %219 = vmatprep.subr.bf16.mxu0 %v189
    %220 = vmatpush1.bf16.msra.mxu0 %v188
    %221 = vmatprep.subr.bf16.mxu0 %v187
    %222 = vmatpush1.bf16.msra.mxu0 %v186
    %223 = vmatprep.subr.bf16.mxu0 0
    %224 = vmatpush2.bf16.msra.mxu0 0
    %225 = vmatprep.subr.bf16.mxu0 0
    %226 = vmatpush2.bf16.msra.mxu0 0
    %227 = vmatprep.subr.bf16.mxu0 0
    %228 = vmatpush2.bf16.msra.mxu0 0
    %229 = vmatprep.subr.bf16.mxu0 0
    %230 = vmatpush2.bf16.msra.mxu0 0
    %231 = vmatprep.subr.bf16.mxu0 0
    %232 = vmatpush2.bf16.msra.mxu0 0
    %233 = vmatprep.subr.bf16.mxu0 0
    %234 = vmatpush2.bf16.msra.mxu0 0
    %235 = vmatprep.subr.bf16.mxu0 0
    %236 = vmatpush2.bf16.msra.mxu0 0
    %237 = vmatprep.subr.bf16.mxu0 0
    %238 = vmatpush2.bf16.msra.mxu0 0
    %239 = vmatprep.mubr.bf16.mxu0 0
    %240 = vmatmul.mubr.bf16.gmra.mxu0 %v196
    %v241 = vpop.f32.mrf.mxu0
    %v242 = vadd.f32 0.0, %v241
    %v243 = vpop.f32.mrf.mxu0
    %v244 = vadd.f32 0.0, %v243
    %v245 = vpop.f32.mrf.mxu0
    %v246 = vadd.f32 0.0, %v245
    %v247 = vpop.f32.mrf.mxu0
    %v248 = vadd.f32 0.0, %v247
    %249 = vmatprep.mubr.bf16.mxu0 0
    %250 = vmatmul.mubr.bf16.gmra.mxu0 %v199
    %v251 = vpop.f32.mrf.mxu0
    %v252 = vadd.f32 0.0, %v251
    %v253 = vpop.f32.mrf.mxu0
    %v254 = vadd.f32 0.0, %v253
    %v255 = vpop.f32.mrf.mxu0
    %v256 = vadd.f32 0.0, %v255
    %v257 = vpop.f32.mrf.mxu0
    %v258 = vadd.f32 0.0, %v257
    %259 = vmatprep.mubr.bf16.mxu0 0
    %260 = vmatmul.mubr.bf16.gmra.mxu0 %v202
    %v261 = vpop.f32.mrf.mxu0
    %v262 = vadd.f32 0.0, %v261
    %v263 = vpop.f32.mrf.mxu0
    %v264 = vadd.f32 0.0, %v263
    %v265 = vpop.f32.mrf.mxu0
    %v266 = vadd.f32 0.0, %v265
    %v267 = vpop.f32.mrf.mxu0
    %v268 = vadd.f32 0.0, %v267
    %269 = vmatprep.mubr.bf16.mxu0 0
    %270 = vmatmul.mubr.bf16.gmra.mxu0 %v205
    %v271 = vpop.f32.mrf.mxu0
    %v272 = vadd.f32 0.0, %v271
    %v273 = vpop.f32.mrf.mxu0
    %v274 = vadd.f32 0.0, %v273
    %v275 = vpop.f32.mrf.mxu0
    %v276 = vadd.f32 0.0, %v275
    %v277 = vpop.f32.mrf.mxu0
    %v278 = vadd.f32 0.0, %v277
    %279 = vdwg.mxu0
    %280 = vst [vmem:[#allocation3] sm:$0xff] %v242
    %281 = vst [vmem:[#allocation3 + $0x8] sm:$0xff] %v244
    %282 = vst [vmem:[#allocation3 + $0x10] sm:$0xff] %v246
    %283 = vst [vmem:[#allocation3 + $0x18] sm:$0xff] %v248
    %284 = vst [vmem:[#allocation3 + $0x20] sm:$0xff] %v252
    %285 = vst [vmem:[#allocation3 + $0x28] sm:$0xff] %v254
    %286 = vst [vmem:[#allocation3 + $0x30] sm:$0xff] %v256
    %287 = vst [vmem:[#allocation3 + $0x38] sm:$0xff] %v258
    %288 = vst [vmem:[#allocation3 + $0x40] sm:$0xff] %v262
    %289 = vst [vmem:[#allocation3 + $0x48] sm:$0xff] %v264
    %290 = vst [vmem:[#allocation3 + $0x50] sm:$0xff] %v266
    %291 = vst [vmem:[#allocation3 + $0x58] sm:$0xff] %v268
    %292 = vst [vmem:[#allocation3 + $0x60] sm:$0xff] %v272
    %293 = vst [vmem:[#allocation3 + $0x68] sm:$0xff] %v274
    %294 = vst [vmem:[#allocation3 + $0x70] sm:$0xff] %v276
    %295 = vst [vmem:[#allocation3 + $0x78] sm:$0xff] %v278
    %v296 = vld [vmem:[#allocation4] sm:$0xff]
    %v297 = vld [vmem:[#allocation4 + $0x8] sm:$0xff]
    %v298 = vld [vmem:[#allocation4 + $0x10] sm:$0xff]
    %v299 = vld [vmem:[#allocation4 + $0x18] sm:$0xff]
    %v300 = vld [vmem:[#allocation4 + $0x20] sm:$0xff]
    %v301 = vld [vmem:[#allocation4 + $0x28] sm:$0xff]
    %v302 = vld [vmem:[#allocation4 + $0x30] sm:$0xff]
    %v303 = vld [vmem:[#allocation4 + $0x38] sm:$0xff]
    %v304 = vld [vmem:[#allocation4 + $0x40] sm:$0xff]
    %v305 = vld [vmem:[#allocation4 + $0x48] sm:$0xff]
    %v306 = vld [vmem:[#allocation4 + $0x50] sm:$0xff]
    %v307 = vld [vmem:[#allocation4 + $0x58] sm:$0xff]
    %v308 = vld [vmem:[#allocation4 + $0x60] sm:$0xff]
    %v309 = vld [vmem:[#allocation4 + $0x68] sm:$0xff]
    %v310 = vld [vmem:[#allocation4 + $0x70] sm:$0xff]
    %v311 = vld [vmem:[#allocation4 + $0x78] sm:$0xff]
    %v312 = vld [vmem:[#allocation7] sm:$0xf]
    %v313 = vld [vmem:[#allocation7 + $0x4] sm:$0xf]
    %v314 = vld [vmem:[#allocation7 + $0x8] sm:$0xf]
    %v315 = vld [vmem:[#allocation7 + $0xc] sm:$0xf]
    %v316 = vld [vmem:[#allocation7 + $0x10] sm:$0xf]
    %v317 = vld [vmem:[#allocation7 + $0x14] sm:$0xf]
    %v318 = vld [vmem:[#allocation7 + $0x18] sm:$0xf]
    %v319 = vld [vmem:[#allocation7 + $0x1c] sm:$0xf]
    %v320 = vld [vmem:[#allocation7 + $0x20] sm:$0xf]
    %v321 = vld [vmem:[#allocation7 + $0x24] sm:$0xf]
    %v322 = vld [vmem:[#allocation7 + $0x28] sm:$0xf]
    %v323 = vld [vmem:[#allocation7 + $0x2c] sm:$0xf]
    %v324 = vld [vmem:[#allocation7 + $0x30] sm:$0xf]
    %v325 = vld [vmem:[#allocation7 + $0x34] sm:$0xf]
    %v326 = vld [vmem:[#allocation7 + $0x38] sm:$0xf]
    %v327 = vld [vmem:[#allocation7 + $0x3c] sm:$0xf]
    %v328 = vld [vmem:[#allocation7 + $0x40] sm:$0xf]
    %v329 = vld [vmem:[#allocation7 + $0x44] sm:$0xf]
    %v330 = vld [vmem:[#allocation7 + $0x48] sm:$0xf]
    %v331 = vld [vmem:[#allocation7 + $0x4c] sm:$0xf]
    %v332 = vld [vmem:[#allocation7 + $0x50] sm:$0xf]
    %v333 = vld [vmem:[#allocation7 + $0x54] sm:$0xf]
    %v334 = vld [vmem:[#allocation7 + $0x58] sm:$0xf]
    %v335 = vld [vmem:[#allocation7 + $0x5c] sm:$0xf]
    %v336 = vld [vmem:[#allocation7 + $0x60] sm:$0xf]
    %v337 = vld [vmem:[#allocation7 + $0x64] sm:$0xf]
    %v338 = vld [vmem:[#allocation7 + $0x68] sm:$0xf]
    %v339 = vld [vmem:[#allocation7 + $0x6c] sm:$0xf]
    %v340 = vld [vmem:[#allocation7 + $0x70] sm:$0xf]
    %v341 = vld [vmem:[#allocation7 + $0x74] sm:$0xf]
    %v342 = vld [vmem:[#allocation7 + $0x78] sm:$0xf]
    %v343 = vld [vmem:[#allocation7 + $0x7c] sm:$0xf]
    %v344 = vld [vmem:[#allocation2] sm:$0xff]
    %s345 = smul.u32 0, 2
    %s346 = smul.addr %s345, 8
    %s347 = scalar_lea.vmem [#allocation3], %s346
    %v348 = vld [vmem:[%s347] sm:$0xff]
    %v349 = vld [vmem:[%s347 + $0x8] sm:$0xff]
    %v350 = vadd.f32 %v348, %v136
    %v351 = vadd.f32 %v349, %v138
    %v352 = vpack.c.bf16 %v344, %v344
    %v369 = vunpack.c.l.b16 %v296
    %v370 = vunpack.c.h.b16 %v296
    %v371 = vunpack.c.l.b16 %v297
    %v372 = vunpack.c.h.b16 %v297
    %v373 = vunpack.c.l.b16 %v298
    %v374 = vunpack.c.h.b16 %v298
    %v375 = vunpack.c.l.b16 %v299
    %v376 = vunpack.c.h.b16 %v299
    %v377 = vunpack.c.l.b16 %v300
    %v378 = vunpack.c.h.b16 %v300
    %v379 = vunpack.c.l.b16 %v301
    %v380 = vunpack.c.h.b16 %v301
    %v381 = vunpack.c.l.b16 %v302
    %v382 = vunpack.c.h.b16 %v302
    %v383 = vunpack.c.l.b16 %v303
    %v384 = vunpack.c.h.b16 %v303
    %v385 = vunpack.c.l.b16 %v304
    %v386 = vunpack.c.h.b16 %v304
    %v387 = vunpack.c.l.b16 %v305
    %v388 = vunpack.c.h.b16 %v305
    %v389 = vunpack.c.l.b16 %v306
    %v390 = vunpack.c.h.b16 %v306
    %v391 = vunpack.c.l.b16 %v307
    %v392 = vunpack.c.h.b16 %v307
    %v393 = vunpack.c.l.b16 %v308
    %v394 = vunpack.c.h.b16 %v308
    %v395 = vunpack.c.l.b16 %v309
    %v396 = vunpack.c.h.b16 %v309
    %v397 = vunpack.c.l.b16 %v310
    %v398 = vunpack.c.h.b16 %v310
    %v399 = vunpack.c.l.b16 %v311
    %v400 = vunpack.c.h.b16 %v311
    %v401 = vpack.c.b16 %v371, %v369
    %v402 = vpack.c.b16 %v372, %v370
    %v403 = vpack.c.b16 %v375, %v373
    %v404 = vpack.c.b16 %v376, %v374
    %v405 = vpack.c.b16 %v379, %v377
    %v406 = vpack.c.b16 %v380, %v378
    %v407 = vpack.c.b16 %v383, %v381
    %v408 = vpack.c.b16 %v384, %v382
    %v409 = vpack.c.b16 %v387, %v385
    %v410 = vpack.c.b16 %v388, %v386
    %v411 = vpack.c.b16 %v391, %v389
    %v412 = vpack.c.b16 %v392, %v390
    %v413 = vpack.c.b16 %v395, %v393
    %v414 = vpack.c.b16 %v396, %v394
    %v415 = vpack.c.b16 %v399, %v397
    %v416 = vpack.c.b16 %v400, %v398
    %433 = vmatprep.subr.bf16.mxu0 %v416
    %434 = vmatpush1.bf16.msra.mxu0 %v415
    %435 = vmatprep.subr.bf16.mxu0 %v414
    %436 = vmatpush1.bf16.msra.mxu0 %v413
    %437 = vmatprep.subr.bf16.mxu0 %v412
    %438 = vmatpush1.bf16.msra.mxu0 %v411
    %439 = vmatprep.subr.bf16.mxu0 %v410
    %440 = vmatpush1.bf16.msra.mxu0 %v409
    %441 = vmatprep.subr.bf16.mxu0 %v408
    %442 = vmatpush1.bf16.msra.mxu0 %v407
    %443 = vmatprep.subr.bf16.mxu0 %v406
    %444 = vmatpush1.bf16.msra.mxu0 %v405
    %445 = vmatprep.subr.bf16.mxu0 %v404
    %446 = vmatpush1.bf16.msra.mxu0 %v403
    %447 = vmatprep.subr.bf16.mxu0 %v402
    %448 = vmatpush1.bf16.msra.mxu0 %v401
    %449 = vmatprep.subr.bf16.mxu0 0
    %450 = vmatpush2.bf16.msra.mxu0 0
    %451 = vmatprep.subr.bf16.mxu0 0
    %452 = vmatpush2.bf16.msra.mxu0 0
    %453 = vmatprep.subr.bf16.mxu0 0
    %454 = vmatpush2.bf16.msra.mxu0 0
    %455 = vmatprep.subr.bf16.mxu0 0
    %456 = vmatpush2.bf16.msra.mxu0 0
    %457 = vmatprep.subr.bf16.mxu0 0
    %458 = vmatpush2.bf16.msra.mxu0 0
    %459 = vmatprep.subr.bf16.mxu0 0
    %460 = vmatpush2.bf16.msra.mxu0 0
    %461 = vmatprep.subr.bf16.mxu0 0
    %462 = vmatpush2.bf16.msra.mxu0 0
    %463 = vmatprep.subr.bf16.mxu0 0
    %464 = vmatpush2.bf16.msra.mxu0 0
    %465 = vmatprep.mubr.bf16.mxu0 0
    %466 = vmatmul.mubr.bf16.gmra.mxu0 %v352
    %v467 = vpop.f32.mrf.mxu0
    %v468 = vadd.f32 0.0, %v467
    %v469 = vpop.f32.mrf.mxu0
    %v470 = vadd.f32 0.0, %v469
    %v471 = vpop.f32.mrf.mxu0
    %v472 = vpop.f32.mrf.mxu0
    %473 = vdwg.mxu0
    %v474 = vadd.f32 %v350, %v468
    %v475 = vadd.f32 %v351, %v470
    %v476 = vpack.c.bf16 %v474, %v474
    %v477 = vpack.c.bf16 %v475, %v475
    %v510 = vunpack.c.l.b16 %v312
    %v511 = vunpack.c.l.b16 %v313
    %v512 = vunpack.c.l.b16 %v314
    %v513 = vunpack.c.l.b16 %v315
    %v514 = vunpack.c.l.b16 %v316
    %v515 = vunpack.c.l.b16 %v317
    %v516 = vunpack.c.l.b16 %v318
    %v517 = vunpack.c.l.b16 %v319
    %v518 = vunpack.c.l.b16 %v320
    %v519 = vunpack.c.l.b16 %v321
    %v520 = vunpack.c.l.b16 %v322
    %v521 = vunpack.c.l.b16 %v323
    %v522 = vunpack.c.l.b16 %v324
    %v523 = vunpack.c.l.b16 %v325
    %v524 = vunpack.c.l.b16 %v326
    %v525 = vunpack.c.l.b16 %v327
    %v526 = vunpack.c.l.b16 %v328
    %v527 = vunpack.c.l.b16 %v329
    %v528 = vunpack.c.l.b16 %v330
    %v529 = vunpack.c.l.b16 %v331
    %v530 = vunpack.c.l.b16 %v332
    %v531 = vunpack.c.l.b16 %v333
    %v532 = vunpack.c.l.b16 %v334
    %v533 = vunpack.c.l.b16 %v335
    %v534 = vunpack.c.l.b16 %v336
    %v535 = vunpack.c.l.b16 %v337
    %v536 = vunpack.c.l.b16 %v338
    %v537 = vunpack.c.l.b16 %v339
    %v538 = vunpack.c.l.b16 %v340
    %v539 = vunpack.c.l.b16 %v341
    %v540 = vunpack.c.l.b16 %v342
    %v541 = vunpack.c.l.b16 %v343
    %v542 = vpack.c.b16 %v511, %v510
    %v543 = vpack.c.b16 %v513, %v512
    %v544 = vpack.c.b16 %v515, %v514
    %v545 = vpack.c.b16 %v517, %v516
    %v546 = vpack.c.b16 %v519, %v518
    %v547 = vpack.c.b16 %v521, %v520
    %v548 = vpack.c.b16 %v523, %v522
    %v549 = vpack.c.b16 %v525, %v524
    %v550 = vpack.c.b16 %v527, %v526
    %v551 = vpack.c.b16 %v529, %v528
    %v552 = vpack.c.b16 %v531, %v530
    %v553 = vpack.c.b16 %v533, %v532
    %v554 = vpack.c.b16 %v535, %v534
    %v555 = vpack.c.b16 %v537, %v536
    %v556 = vpack.c.b16 %v539, %v538
    %v557 = vpack.c.b16 %v541, %v540
    %574 = vmatprep.subr.bf16.mxu0 0
    %575 = vmatpush1.bf16.msra.mxu0 %v549
    %576 = vmatprep.subr.bf16.mxu0 0
    %577 = vmatpush1.bf16.msra.mxu0 %v548
    %578 = vmatprep.subr.bf16.mxu0 0
    %579 = vmatpush1.bf16.msra.mxu0 %v547
    %580 = vmatprep.subr.bf16.mxu0 0
    %581 = vmatpush1.bf16.msra.mxu0 %v546
    %582 = vmatprep.subr.bf16.mxu0 0
    %583 = vmatpush1.bf16.msra.mxu0 %v545
    %584 = vmatprep.subr.bf16.mxu0 0
    %585 = vmatpush1.bf16.msra.mxu0 %v544
    %586 = vmatprep.subr.bf16.mxu0 0
    %587 = vmatpush1.bf16.msra.mxu0 %v543
    %588 = vmatprep.subr.bf16.mxu0 0
    %589 = vmatpush1.bf16.msra.mxu0 %v542
    %590 = vmatprep.subr.bf16.mxu0 0
    %591 = vmatpush2.bf16.msra.mxu0 %v557
    %592 = vmatprep.subr.bf16.mxu0 0
    %593 = vmatpush2.bf16.msra.mxu0 %v556
    %594 = vmatprep.subr.bf16.mxu0 0
    %595 = vmatpush2.bf16.msra.mxu0 %v555
    %596 = vmatprep.subr.bf16.mxu0 0
    %597 = vmatpush2.bf16.msra.mxu0 %v554
    %598 = vmatprep.subr.bf16.mxu0 0
    %599 = vmatpush2.bf16.msra.mxu0 %v553
    %600 = vmatprep.subr.bf16.mxu0 0
    %601 = vmatpush2.bf16.msra.mxu0 %v552
    %602 = vmatprep.subr.bf16.mxu0 0
    %603 = vmatpush2.bf16.msra.mxu0 %v551
    %604 = vmatprep.subr.bf16.mxu0 0
    %605 = vmatpush2.bf16.msra.mxu0 %v550
    %606 = vmatprep.mubr.bf16.mxu0 %v477
    %607 = vmatmul.mubr.bf16.gmra.mxu0 %v476
    %v608 = vpop.f32.mrf.mxu0
    %v609 = vadd.f32 0.0, %v608
    %v610 = vpop.f32.mrf.mxu0
    %v611 = vpop.f32.mrf.mxu0
    %v612 = vpop.f32.mrf.mxu0
    %613 = vdwg.mxu0
    %614 = vst [vmem:[#allocation9] sm:$0xff] %v609
    %s615 = smul.u32 1, 2
    %s616 = smul.addr %s615, 8
    %s617 = scalar_lea.vmem [#allocation3], %s616
    %v618 = vld [vmem:[%s617] sm:$0xff]
    %v619 = vld [vmem:[%s617 + $0x8] sm:$0xff]
    %v620 = vadd.f32 %v618, %v136
    %v621 = vadd.f32 %v619, %v138
    %622 = vmatprep.subr.bf16.mxu0 %v416
    %623 = vmatpush1.bf16.msra.mxu0 %v415
    %624 = vmatprep.subr.bf16.mxu0 %v414
    %625 = vmatpush1.bf16.msra.mxu0 %v413
    %626 = vmatprep.subr.bf16.mxu0 %v412
    %627 = vmatpush1.bf16.msra.mxu0 %v411
    %628 = vmatprep.subr.bf16.mxu0 %v410
    %629 = vmatpush1.bf16.msra.mxu0 %v409
    %630 = vmatprep.subr.bf16.mxu0 %v408
    %631 = vmatpush1.bf16.msra.mxu0 %v407
    %632 = vmatprep.subr.bf16.mxu0 %v406
    %633 = vmatpush1.bf16.msra.mxu0 %v405
    %634 = vmatprep.subr.bf16.mxu0 %v404
    %635 = vmatpush1.bf16.msra.mxu0 %v403
    %636 = vmatprep.subr.bf16.mxu0 %v402
    %637 = vmatpush1.bf16.msra.mxu0 %v401
    %638 = vmatprep.subr.bf16.mxu0 0
    %639 = vmatpush2.bf16.msra.mxu0 0
    %640 = vmatprep.subr.bf16.mxu0 0
    %641 = vmatpush2.bf16.msra.mxu0 0
    %642 = vmatprep.subr.bf16.mxu0 0
    %643 = vmatpush2.bf16.msra.mxu0 0
    %644 = vmatprep.subr.bf16.mxu0 0
    %645 = vmatpush2.bf16.msra.mxu0 0
    %646 = vmatprep.subr.bf16.mxu0 0
    %647 = vmatpush2.bf16.msra.mxu0 0
    %648 = vmatprep.subr.bf16.mxu0 0
    %649 = vmatpush2.bf16.msra.mxu0 0
    %650 = vmatprep.subr.bf16.mxu0 0
    %651 = vmatpush2.bf16.msra.mxu0 0
    %652 = vmatprep.subr.bf16.mxu0 0
    %653 = vmatpush2.bf16.msra.mxu0 0
    %654 = vmatprep.mubr.bf16.mxu0 0
    %655 = vmatmul.mubr.bf16.gmra.mxu0 %v476
    %v656 = vpop.f32.mrf.mxu0
    %v657 = vadd.f32 0.0, %v656
    %v658 = vpop.f32.mrf.mxu0
    %v659 = vadd.f32 0.0, %v658
    %v660 = vpop.f32.mrf.mxu0
    %v661 = vpop.f32.mrf.mxu0
    %662 = vdwg.mxu0
    %v663 = vadd.f32 %v620, %v657
    %v664 = vadd.f32 %v621, %v659
    %v665 = vpack.c.bf16 %v663, %v663
    %v666 = vpack.c.bf16 %v664, %v664
    %667 = vmatprep.subr.bf16.mxu0 0
    %668 = vmatpush1.bf16.msra.mxu0 %v549
    %669 = vmatprep.subr.bf16.mxu0 0
    %670 = vmatpush1.bf16.msra.mxu0 %v548
    %671 = vmatprep.subr.bf16.mxu0 0
    %672 = vmatpush1.bf16.msra.mxu0 %v547
    %673 = vmatprep.subr.bf16.mxu0 0
    %674 = vmatpush1.bf16.msra.mxu0 %v546
    %675 = vmatprep.subr.bf16.mxu0 0
    %676 = vmatpush1.bf16.msra.mxu0 %v545
    %677 = vmatprep.subr.bf16.mxu0 0
    %678 = vmatpush1.bf16.msra.mxu0 %v544
    %679 = vmatprep.subr.bf16.mxu0 0
    %680 = vmatpush1.bf16.msra.mxu0 %v543
    %681 = vmatprep.subr.bf16.mxu0 0
    %682 = vmatpush1.bf16.msra.mxu0 %v542
    %683 = vmatprep.subr.bf16.mxu0 0
    %684 = vmatpush2.bf16.msra.mxu0 %v557
    %685 = vmatprep.subr.bf16.mxu0 0
    %686 = vmatpush2.bf16.msra.mxu0 %v556
    %687 = vmatprep.subr.bf16.mxu0 0
    %688 = vmatpush2.bf16.msra.mxu0 %v555
    %689 = vmatprep.subr.bf16.mxu0 0
    %690 = vmatpush2.bf16.msra.mxu0 %v554
    %691 = vmatprep.subr.bf16.mxu0 0
    %692 = vmatpush2.bf16.msra.mxu0 %v553
    %693 = vmatprep.subr.bf16.mxu0 0
    %694 = vmatpush2.bf16.msra.mxu0 %v552
    %695 = vmatprep.subr.bf16.mxu0 0
    %696 = vmatpush2.bf16.msra.mxu0 %v551
    %697 = vmatprep.subr.bf16.mxu0 0
    %698 = vmatpush2.bf16.msra.mxu0 %v550
    %699 = vmatprep.mubr.bf16.mxu0 %v666
    %700 = vmatmul.mubr.bf16.gmra.mxu0 %v665
    %v701 = vpop.f32.mrf.mxu0
    %v702 = vadd.f32 0.0, %v701
    %v703 = vpop.f32.mrf.mxu0
    %v704 = vpop.f32.mrf.mxu0
    %v705 = vpop.f32.mrf.mxu0
    %706 = vdwg.mxu0
    %s707 = scalar_lea.vmem [#allocation9], 8
    %708 = vst [vmem:[%s707] sm:$0xff] %v702
    %s709 = smul.u32 2, 2
    %s710 = smul.addr %s709, 8
    %s711 = scalar_lea.vmem [#allocation3], %s710
    %v712 = vld [vmem:[%s711] sm:$0xff]
    %v713 = vld [vmem:[%s711 + $0x8] sm:$0xff]
    %v714 = vadd.f32 %v712, %v136
    %v715 = vadd.f32 %v713, %v138
    %716 = vmatprep.subr.bf16.mxu0 %v416
    %717 = vmatpush1.bf16.msra.mxu0 %v415
    %718 = vmatprep.subr.bf16.mxu0 %v414
    %719 = vmatpush1.bf16.msra.mxu0 %v413
    %720 = vmatprep.subr.bf16.mxu0 %v412
    %721 = vmatpush1.bf16.msra.mxu0 %v411
    %722 = vmatprep.subr.bf16.mxu0 %v410
    %723 = vmatpush1.bf16.msra.mxu0 %v409
    %724 = vmatprep.subr.bf16.mxu0 %v408
    %725 = vmatpush1.bf16.msra.mxu0 %v407
    %726 = vmatprep.subr.bf16.mxu0 %v406
    %727 = vmatpush1.bf16.msra.mxu0 %v405
    %728 = vmatprep.subr.bf16.mxu0 %v404
    %729 = vmatpush1.bf16.msra.mxu0 %v403
    %730 = vmatprep.subr.bf16.mxu0 %v402
    %731 = vmatpush1.bf16.msra.mxu0 %v401
    %732 = vmatprep.subr.bf16.mxu0 0
    %733 = vmatpush2.bf16.msra.mxu0 0
    %734 = vmatprep.subr.bf16.mxu0 0
    %735 = vmatpush2.bf16.msra.mxu0 0
    %736 = vmatprep.subr.bf16.mxu0 0
    %737 = vmatpush2.bf16.msra.mxu0 0
    %738 = vmatprep.subr.bf16.mxu0 0
    %739 = vmatpush2.bf16.msra.mxu0 0
    %740 = vmatprep.subr.bf16.mxu0 0
    %741 = vmatpush2.bf16.msra.mxu0 0
    %742 = vmatprep.subr.bf16.mxu0 0
    %743 = vmatpush2.bf16.msra.mxu0 0
    %744 = vmatprep.subr.bf16.mxu0 0
    %745 = vmatpush2.bf16.msra.mxu0 0
    %746 = vmatprep.subr.bf16.mxu0 0
    %747 = vmatpush2.bf16.msra.mxu0 0
    %748 = vmatprep.mubr.bf16.mxu0 0
    %749 = vmatmul.mubr.bf16.gmra.mxu0 %v665
    %v750 = vpop.f32.mrf.mxu0
    %v751 = vadd.f32 0.0, %v750
    %v752 = vpop.f32.mrf.mxu0
    %v753 = vadd.f32 0.0, %v752
    %v754 = vpop.f32.mrf.mxu0
    %v755 = vpop.f32.mrf.mxu0
    %756 = vdwg.mxu0
    %v757 = vadd.f32 %v714, %v751
    %v758 = vadd.f32 %v715, %v753
    %v759 = vpack.c.bf16 %v757, %v757
    %v760 = vpack.c.bf16 %v758, %v758
    %761 = vmatprep.subr.bf16.mxu0 0
    %762 = vmatpush1.bf16.msra.mxu0 %v549
    %763 = vmatprep.subr.bf16.mxu0 0
    %764 = vmatpush1.bf16.msra.mxu0 %v548
    %765 = vmatprep.subr.bf16.mxu0 0
    %766 = vmatpush1.bf16.msra.mxu0 %v547
    %767 = vmatprep.subr.bf16.mxu0 0
    %768 = vmatpush1.bf16.msra.mxu0 %v546
    %769 = vmatprep.subr.bf16.mxu0 0
    %770 = vmatpush1.bf16.msra.mxu0 %v545
    %771 = vmatprep.subr.bf16.mxu0 0
    %772 = vmatpush1.bf16.msra.mxu0 %v544
    %773 = vmatprep.subr.bf16.mxu0 0
    %774 = vmatpush1.bf16.msra.mxu0 %v543
    %775 = vmatprep.subr.bf16.mxu0 0
    %776 = vmatpush1.bf16.msra.mxu0 %v542
    %777 = vmatprep.subr.bf16.mxu0 0
    %778 = vmatpush2.bf16.msra.mxu0 %v557
    %779 = vmatprep.subr.bf16.mxu0 0
    %780 = vmatpush2.bf16.msra.mxu0 %v556
    %781 = vmatprep.subr.bf16.mxu0 0
    %782 = vmatpush2.bf16.msra.mxu0 %v555
    %783 = vmatprep.subr.bf16.mxu0 0
    %784 = vmatpush2.bf16.msra.mxu0 %v554
    %785 = vmatprep.subr.bf16.mxu0 0
    %786 = vmatpush2.bf16.msra.mxu0 %v553
    %787 = vmatprep.subr.bf16.mxu0 0
    %788 = vmatpush2.bf16.msra.mxu0 %v552
    %789 = vmatprep.subr.bf16.mxu0 0
    %790 = vmatpush2.bf16.msra.mxu0 %v551
    %791 = vmatprep.subr.bf16.mxu0 0
    %792 = vmatpush2.bf16.msra.mxu0 %v550
    %793 = vmatprep.mubr.bf16.mxu0 %v760
    %794 = vmatmul.mubr.bf16.gmra.mxu0 %v759
    %v795 = vpop.f32.mrf.mxu0
    %v796 = vadd.f32 0.0, %v795
    %v797 = vpop.f32.mrf.mxu0
    %v798 = vpop.f32.mrf.mxu0
    %v799 = vpop.f32.mrf.mxu0
    %800 = vdwg.mxu0
    %s801 = scalar_lea.vmem [#allocation9], 16
    %802 = vst [vmem:[%s801] sm:$0xff] %v796
    %s803 = smul.u32 3, 2
    %s804 = smul.addr %s803, 8
    %s805 = scalar_lea.vmem [#allocation3], %s804
    %v806 = vld [vmem:[%s805] sm:$0xff]
    %v807 = vld [vmem:[%s805 + $0x8] sm:$0xff]
    %v808 = vadd.f32 %v806, %v136
    %v809 = vadd.f32 %v807, %v138
    %810 = vmatprep.subr.bf16.mxu0 %v416
    %811 = vmatpush1.bf16.msra.mxu0 %v415
    %812 = vmatprep.subr.bf16.mxu0 %v414
    %813 = vmatpush1.bf16.msra.mxu0 %v413
    %814 = vmatprep.subr.bf16.mxu0 %v412
    %815 = vmatpush1.bf16.msra.mxu0 %v411
    %816 = vmatprep.subr.bf16.mxu0 %v410
    %817 = vmatpush1.bf16.msra.mxu0 %v409
    %818 = vmatprep.subr.bf16.mxu0 %v408
    %819 = vmatpush1.bf16.msra.mxu0 %v407
    %820 = vmatprep.subr.bf16.mxu0 %v406
    %821 = vmatpush1.bf16.msra.mxu0 %v405
    %822 = vmatprep.subr.bf16.mxu0 %v404
    %823 = vmatpush1.bf16.msra.mxu0 %v403
    %824 = vmatprep.subr.bf16.mxu0 %v402
    %825 = vmatpush1.bf16.msra.mxu0 %v401
    %826 = vmatprep.subr.bf16.mxu0 0
    %827 = vmatpush2.bf16.msra.mxu0 0
    %828 = vmatprep.subr.bf16.mxu0 0
    %829 = vmatpush2.bf16.msra.mxu0 0
    %830 = vmatprep.subr.bf16.mxu0 0
    %831 = vmatpush2.bf16.msra.mxu0 0
    %832 = vmatprep.subr.bf16.mxu0 0
    %833 = vmatpush2.bf16.msra.mxu0 0
    %834 = vmatprep.subr.bf16.mxu0 0
    %835 = vmatpush2.bf16.msra.mxu0 0
    %836 = vmatprep.subr.bf16.mxu0 0
    %837 = vmatpush2.bf16.msra.mxu0 0
    %838 = vmatprep.subr.bf16.mxu0 0
    %839 = vmatpush2.bf16.msra.mxu0 0
    %840 = vmatprep.subr.bf16.mxu0 0
    %841 = vmatpush2.bf16.msra.mxu0 0
    %842 = vmatprep.mubr.bf16.mxu0 0
    %843 = vmatmul.mubr.bf16.gmra.mxu0 %v759
    %v844 = vpop.f32.mrf.mxu0
    %v845 = vadd.f32 0.0, %v844
    %v846 = vpop.f32.mrf.mxu0
    %v847 = vadd.f32 0.0, %v846
    %v848 = vpop.f32.mrf.mxu0
    %v849 = vpop.f32.mrf.mxu0
    %850 = vdwg.mxu0
    %v851 = vadd.f32 %v808, %v845
    %v852 = vadd.f32 %v809, %v847
    %v853 = vpack.c.bf16 %v851, %v851
    %v854 = vpack.c.bf16 %v852, %v852
    %855 = vmatprep.subr.bf16.mxu0 0
    %856 = vmatpush1.bf16.msra.mxu0 %v549
    %857 = vmatprep.subr.bf16.mxu0 0
    %858 = vmatpush1.bf16.msra.mxu0 %v548
    %859 = vmatprep.subr.bf16.mxu0 0
    %860 = vmatpush1.bf16.msra.mxu0 %v547
    %861 = vmatprep.subr.bf16.mxu0 0
    %862 = vmatpush1.bf16.msra.mxu0 %v546
    %863 = vmatprep.subr.bf16.mxu0 0
    %864 = vmatpush1.bf16.msra.mxu0 %v545
    %865 = vmatprep.subr.bf16.mxu0 0
    %866 = vmatpush1.bf16.msra.mxu0 %v544
    %867 = vmatprep.subr.bf16.mxu0 0
    %868 = vmatpush1.bf16.msra.mxu0 %v543
    %869 = vmatprep.subr.bf16.mxu0 0
    %870 = vmatpush1.bf16.msra.mxu0 %v542
    %871 = vmatprep.subr.bf16.mxu0 0
    %872 = vmatpush2.bf16.msra.mxu0 %v557
    %873 = vmatprep.subr.bf16.mxu0 0
    %874 = vmatpush2.bf16.msra.mxu0 %v556
    %875 = vmatprep.subr.bf16.mxu0 0
    %876 = vmatpush2.bf16.msra.mxu0 %v555
    %877 = vmatprep.subr.bf16.mxu0 0
    %878 = vmatpush2.bf16.msra.mxu0 %v554
    %879 = vmatprep.subr.bf16.mxu0 0
    %880 = vmatpush2.bf16.msra.mxu0 %v553
    %881 = vmatprep.subr.bf16.mxu0 0
    %882 = vmatpush2.bf16.msra.mxu0 %v552
    %883 = vmatprep.subr.bf16.mxu0 0
    %884 = vmatpush2.bf16.msra.mxu0 %v551
    %885 = vmatprep.subr.bf16.mxu0 0
    %886 = vmatpush2.bf16.msra.mxu0 %v550
    %887 = vmatprep.mubr.bf16.mxu0 %v854
    %888 = vmatmul.mubr.bf16.gmra.mxu0 %v853
    %v889 = vpop.f32.mrf.mxu0
    %v890 = vadd.f32 0.0, %v889
    %v891 = vpop.f32.mrf.mxu0
    %v892 = vpop.f32.mrf.mxu0
    %v893 = vpop.f32.mrf.mxu0
    %894 = vdwg.mxu0
    %s895 = scalar_lea.vmem [#allocation9], 24
    %896 = vst [vmem:[%s895] sm:$0xff] %v890
    %s897 = smul.u32 4, 2
    %s898 = smul.addr %s897, 8
    %s899 = scalar_lea.vmem [#allocation3], %s898
    %v900 = vld [vmem:[%s899] sm:$0xff]
    %v901 = vld [vmem:[%s899 + $0x8] sm:$0xff]
    %v902 = vadd.f32 %v900, %v136
    %v903 = vadd.f32 %v901, %v138
    %904 = vmatprep.subr.bf16.mxu0 %v416
    %905 = vmatpush1.bf16.msra.mxu0 %v415
    %906 = vmatprep.subr.bf16.mxu0 %v414
    %907 = vmatpush1.bf16.msra.mxu0 %v413
    %908 = vmatprep.subr.bf16.mxu0 %v412
    %909 = vmatpush1.bf16.msra.mxu0 %v411
    %910 = vmatprep.subr.bf16.mxu0 %v410
    %911 = vmatpush1.bf16.msra.mxu0 %v409
    %912 = vmatprep.subr.bf16.mxu0 %v408
    %913 = vmatpush1.bf16.msra.mxu0 %v407
    %914 = vmatprep.subr.bf16.mxu0 %v406
    %915 = vmatpush1.bf16.msra.mxu0 %v405
    %916 = vmatprep.subr.bf16.mxu0 %v404
    %917 = vmatpush1.bf16.msra.mxu0 %v403
    %918 = vmatprep.subr.bf16.mxu0 %v402
    %919 = vmatpush1.bf16.msra.mxu0 %v401
    %920 = vmatprep.subr.bf16.mxu0 0
    %921 = vmatpush2.bf16.msra.mxu0 0
    %922 = vmatprep.subr.bf16.mxu0 0
    %923 = vmatpush2.bf16.msra.mxu0 0
    %924 = vmatprep.subr.bf16.mxu0 0
    %925 = vmatpush2.bf16.msra.mxu0 0
    %926 = vmatprep.subr.bf16.mxu0 0
    %927 = vmatpush2.bf16.msra.mxu0 0
    %928 = vmatprep.subr.bf16.mxu0 0
    %929 = vmatpush2.bf16.msra.mxu0 0
    %930 = vmatprep.subr.bf16.mxu0 0
    %931 = vmatpush2.bf16.msra.mxu0 0
    %932 = vmatprep.subr.bf16.mxu0 0
    %933 = vmatpush2.bf16.msra.mxu0 0
    %934 = vmatprep.subr.bf16.mxu0 0
    %935 = vmatpush2.bf16.msra.mxu0 0
    %936 = vmatprep.mubr.bf16.mxu0 0
    %937 = vmatmul.mubr.bf16.gmra.mxu0 %v853
    %v938 = vpop.f32.mrf.mxu0
    %v939 = vadd.f32 0.0, %v938
    %v940 = vpop.f32.mrf.mxu0
    %v941 = vadd.f32 0.0, %v940
    %v942 = vpop.f32.mrf.mxu0
    %v943 = vpop.f32.mrf.mxu0
    %944 = vdwg.mxu0
    %v945 = vadd.f32 %v902, %v939
    %v946 = vadd.f32 %v903, %v941
    %v947 = vpack.c.bf16 %v945, %v945
    %v948 = vpack.c.bf16 %v946, %v946
    %949 = vmatprep.subr.bf16.mxu0 0
    %950 = vmatpush1.bf16.msra.mxu0 %v549
    %951 = vmatprep.subr.bf16.mxu0 0
    %952 = vmatpush1.bf16.msra.mxu0 %v548
    %953 = vmatprep.subr.bf16.mxu0 0
    %954 = vmatpush1.bf16.msra.mxu0 %v547
    %955 = vmatprep.subr.bf16.mxu0 0
    %956 = vmatpush1.bf16.msra.mxu0 %v546
    %957 = vmatprep.subr.bf16.mxu0 0
    %958 = vmatpush1.bf16.msra.mxu0 %v545
    %959 = vmatprep.subr.bf16.mxu0 0
    %960 = vmatpush1.bf16.msra.mxu0 %v544
    %961 = vmatprep.subr.bf16.mxu0 0
    %962 = vmatpush1.bf16.msra.mxu0 %v543
    %963 = vmatprep.subr.bf16.mxu0 0
    %964 = vmatpush1.bf16.msra.mxu0 %v542
    %965 = vmatprep.subr.bf16.mxu0 0
    %966 = vmatpush2.bf16.msra.mxu0 %v557
    %967 = vmatprep.subr.bf16.mxu0 0
    %968 = vmatpush2.bf16.msra.mxu0 %v556
    %969 = vmatprep.subr.bf16.mxu0 0
    %970 = vmatpush2.bf16.msra.mxu0 %v555
    %971 = vmatprep.subr.bf16.mxu0 0
    %972 = vmatpush2.bf16.msra.mxu0 %v554
    %973 = vmatprep.subr.bf16.mxu0 0
    %974 = vmatpush2.bf16.msra.mxu0 %v553
    %975 = vmatprep.subr.bf16.mxu0 0
    %976 = vmatpush2.bf16.msra.mxu0 %v552
    %977 = vmatprep.subr.bf16.mxu0 0
    %978 = vmatpush2.bf16.msra.mxu0 %v551
    %979 = vmatprep.subr.bf16.mxu0 0
    %980 = vmatpush2.bf16.msra.mxu0 %v550
    %981 = vmatprep.mubr.bf16.mxu0 %v948
    %982 = vmatmul.mubr.bf16.gmra.mxu0 %v947
    %v983 = vpop.f32.mrf.mxu0
    %v984 = vadd.f32 0.0, %v983
    %v985 = vpop.f32.mrf.mxu0
    %v986 = vpop.f32.mrf.mxu0
    %v987 = vpop.f32.mrf.mxu0
    %988 = vdwg.mxu0
    %s989 = scalar_lea.vmem [#allocation9], 32
    %990 = vst [vmem:[%s989] sm:$0xff] %v984
    %s991 = smul.u32 5, 2
    %s992 = smul.addr %s991, 8
    %s993 = scalar_lea.vmem [#allocation3], %s992
    %v994 = vld [vmem:[%s993] sm:$0xff]
    %v995 = vld [vmem:[%s993 + $0x8] sm:$0xff]
    %v996 = vadd.f32 %v994, %v136
    %v997 = vadd.f32 %v995, %v138
    %998 = vmatprep.subr.bf16.mxu0 %v416
    %999 = vmatpush1.bf16.msra.mxu0 %v415
    %1000 = vmatprep.subr.bf16.mxu0 %v414
    %1001 = vmatpush1.bf16.msra.mxu0 %v413
    %1002 = vmatprep.subr.bf16.mxu0 %v412
    %1003 = vmatpush1.bf16.msra.mxu0 %v411
    %1004 = vmatprep.subr.bf16.mxu0 %v410
    %1005 = vmatpush1.bf16.msra.mxu0 %v409
    %1006 = vmatprep.subr.bf16.mxu0 %v408
    %1007 = vmatpush1.bf16.msra.mxu0 %v407
    %1008 = vmatprep.subr.bf16.mxu0 %v406
    %1009 = vmatpush1.bf16.msra.mxu0 %v405
    %1010 = vmatprep.subr.bf16.mxu0 %v404
    %1011 = vmatpush1.bf16.msra.mxu0 %v403
    %1012 = vmatprep.subr.bf16.mxu0 %v402
    %1013 = vmatpush1.bf16.msra.mxu0 %v401
    %1014 = vmatprep.subr.bf16.mxu0 0
    %1015 = vmatpush2.bf16.msra.mxu0 0
    %1016 = vmatprep.subr.bf16.mxu0 0
    %1017 = vmatpush2.bf16.msra.mxu0 0
    %1018 = vmatprep.subr.bf16.mxu0 0
    %1019 = vmatpush2.bf16.msra.mxu0 0
    %1020 = vmatprep.subr.bf16.mxu0 0
    %1021 = vmatpush2.bf16.msra.mxu0 0
    %1022 = vmatprep.subr.bf16.mxu0 0
    %1023 = vmatpush2.bf16.msra.mxu0 0
    %1024 = vmatprep.subr.bf16.mxu0 0
    %1025 = vmatpush2.bf16.msra.mxu0 0
    %1026 = vmatprep.subr.bf16.mxu0 0
    %1027 = vmatpush2.bf16.msra.mxu0 0
    %1028 = vmatprep.subr.bf16.mxu0 0
    %1029 = vmatpush2.bf16.msra.mxu0 0
    %1030 = vmatprep.mubr.bf16.mxu0 0
    %1031 = vmatmul.mubr.bf16.gmra.mxu0 %v947
    %v1032 = vpop.f32.mrf.mxu0
    %v1033 = vadd.f32 0.0, %v1032
    %v1034 = vpop.f32.mrf.mxu0
    %v1035 = vadd.f32 0.0, %v1034
    %v1036 = vpop.f32.mrf.mxu0
    %v1037 = vpop.f32.mrf.mxu0
    %1038 = vdwg.mxu0
    %v1039 = vadd.f32 %v996, %v1033
    %v1040 = vadd.f32 %v997, %v1035
    %v1041 = vpack.c.bf16 %v1039, %v1039
    %v1042 = vpack.c.bf16 %v1040, %v1040
    %1043 = vmatprep.subr.bf16.mxu0 0
    %1044 = vmatpush1.bf16.msra.mxu0 %v549
    %1045 = vmatprep.subr.bf16.mxu0 0
    %1046 = vmatpush1.bf16.msra.mxu0 %v548
    %1047 = vmatprep.subr.bf16.mxu0 0
    %1048 = vmatpush1.bf16.msra.mxu0 %v547
    %1049 = vmatprep.subr.bf16.mxu0 0
    %1050 = vmatpush1.bf16.msra.mxu0 %v546
    %1051 = vmatprep.subr.bf16.mxu0 0
    %1052 = vmatpush1.bf16.msra.mxu0 %v545
    %1053 = vmatprep.subr.bf16.mxu0 0
    %1054 = vmatpush1.bf16.msra.mxu0 %v544
    %1055 = vmatprep.subr.bf16.mxu0 0
    %1056 = vmatpush1.bf16.msra.mxu0 %v543
    %1057 = vmatprep.subr.bf16.mxu0 0
    %1058 = vmatpush1.bf16.msra.mxu0 %v542
    %1059 = vmatprep.subr.bf16.mxu0 0
    %1060 = vmatpush2.bf16.msra.mxu0 %v557
    %1061 = vmatprep.subr.bf16.mxu0 0
    %1062 = vmatpush2.bf16.msra.mxu0 %v556
    %1063 = vmatprep.subr.bf16.mxu0 0
    %1064 = vmatpush2.bf16.msra.mxu0 %v555
    %1065 = vmatprep.subr.bf16.mxu0 0
    %1066 = vmatpush2.bf16.msra.mxu0 %v554
    %1067 = vmatprep.subr.bf16.mxu0 0
    %1068 = vmatpush2.bf16.msra.mxu0 %v553
    %1069 = vmatprep.subr.bf16.mxu0 0
    %1070 = vmatpush2.bf16.msra.mxu0 %v552
    %1071 = vmatprep.subr.bf16.mxu0 0
    %1072 = vmatpush2.bf16.msra.mxu0 %v551
    %1073 = vmatprep.subr.bf16.mxu0 0
    %1074 = vmatpush2.bf16.msra.mxu0 %v550
    %1075 = vmatprep.mubr.bf16.mxu0 %v1042
    %1076 = vmatmul.mubr.bf16.gmra.mxu0 %v1041
    %v1077 = vpop.f32.mrf.mxu0
    %v1078 = vadd.f32 0.0, %v1077
    %v1079 = vpop.f32.mrf.mxu0
    %v1080 = vpop.f32.mrf.mxu0
    %v1081 = vpop.f32.mrf.mxu0
    %1082 = vdwg.mxu0
    %s1083 = scalar_lea.vmem [#allocation9], 40
    %1084 = vst [vmem:[%s1083] sm:$0xff] %v1078
    %s1085 = smul.u32 6, 2
    %s1086 = smul.addr %s1085, 8
    %s1087 = scalar_lea.vmem [#allocation3], %s1086
    %v1088 = vld [vmem:[%s1087] sm:$0xff]
    %v1089 = vld [vmem:[%s1087 + $0x8] sm:$0xff]
    %v1090 = vadd.f32 %v1088, %v136
    %v1091 = vadd.f32 %v1089, %v138
    %1092 = vmatprep.subr.bf16.mxu0 %v416
    %1093 = vmatpush1.bf16.msra.mxu0 %v415
    %1094 = vmatprep.subr.bf16.mxu0 %v414
    %1095 = vmatpush1.bf16.msra.mxu0 %v413
    %1096 = vmatprep.subr.bf16.mxu0 %v412
    %1097 = vmatpush1.bf16.msra.mxu0 %v411
    %1098 = vmatprep.subr.bf16.mxu0 %v410
    %1099 = vmatpush1.bf16.msra.mxu0 %v409
    %1100 = vmatprep.subr.bf16.mxu0 %v408
    %1101 = vmatpush1.bf16.msra.mxu0 %v407
    %1102 = vmatprep.subr.bf16.mxu0 %v406
    %1103 = vmatpush1.bf16.msra.mxu0 %v405
    %1104 = vmatprep.subr.bf16.mxu0 %v404
    %1105 = vmatpush1.bf16.msra.mxu0 %v403
    %1106 = vmatprep.subr.bf16.mxu0 %v402
    %1107 = vmatpush1.bf16.msra.mxu0 %v401
    %1108 = vmatprep.subr.bf16.mxu0 0
    %1109 = vmatpush2.bf16.msra.mxu0 0
    %1110 = vmatprep.subr.bf16.mxu0 0
    %1111 = vmatpush2.bf16.msra.mxu0 0
    %1112 = vmatprep.subr.bf16.mxu0 0
    %1113 = vmatpush2.bf16.msra.mxu0 0
    %1114 = vmatprep.subr.bf16.mxu0 0
    %1115 = vmatpush2.bf16.msra.mxu0 0
    %1116 = vmatprep.subr.bf16.mxu0 0
    %1117 = vmatpush2.bf16.msra.mxu0 0
    %1118 = vmatprep.subr.bf16.mxu0 0
    %1119 = vmatpush2.bf16.msra.mxu0 0
    %1120 = vmatprep.subr.bf16.mxu0 0
    %1121 = vmatpush2.bf16.msra.mxu0 0
    %1122 = vmatprep.subr.bf16.mxu0 0
    %1123 = vmatpush2.bf16.msra.mxu0 0
    %1124 = vmatprep.mubr.bf16.mxu0 0
    %1125 = vmatmul.mubr.bf16.gmra.mxu0 %v1041
    %v1126 = vpop.f32.mrf.mxu0
    %v1127 = vadd.f32 0.0, %v1126
    %v1128 = vpop.f32.mrf.mxu0
    %v1129 = vadd.f32 0.0, %v1128
    %v1130 = vpop.f32.mrf.mxu0
    %v1131 = vpop.f32.mrf.mxu0
    %1132 = vdwg.mxu0
    %v1133 = vadd.f32 %v1090, %v1127
    %v1134 = vadd.f32 %v1091, %v1129
    %v1135 = vpack.c.bf16 %v1133, %v1133
    %v1136 = vpack.c.bf16 %v1134, %v1134
    %1137 = vmatprep.subr.bf16.mxu0 0
    %1138 = vmatpush1.bf16.msra.mxu0 %v549
    %1139 = vmatprep.subr.bf16.mxu0 0
    %1140 = vmatpush1.bf16.msra.mxu0 %v548
    %1141 = vmatprep.subr.bf16.mxu0 0
    %1142 = vmatpush1.bf16.msra.mxu0 %v547
    %1143 = vmatprep.subr.bf16.mxu0 0
    %1144 = vmatpush1.bf16.msra.mxu0 %v546
    %1145 = vmatprep.subr.bf16.mxu0 0
    %1146 = vmatpush1.bf16.msra.mxu0 %v545
    %1147 = vmatprep.subr.bf16.mxu0 0
    %1148 = vmatpush1.bf16.msra.mxu0 %v544
    %1149 = vmatprep.subr.bf16.mxu0 0
    %1150 = vmatpush1.bf16.msra.mxu0 %v543
    %1151 = vmatprep.subr.bf16.mxu0 0
    %1152 = vmatpush1.bf16.msra.mxu0 %v542
    %1153 = vmatprep.subr.bf16.mxu0 0
    %1154 = vmatpush2.bf16.msra.mxu0 %v557
    %1155 = vmatprep.subr.bf16.mxu0 0
    %1156 = vmatpush2.bf16.msra.mxu0 %v556
    %1157 = vmatprep.subr.bf16.mxu0 0
    %1158 = vmatpush2.bf16.msra.mxu0 %v555
    %1159 = vmatprep.subr.bf16.mxu0 0
    %1160 = vmatpush2.bf16.msra.mxu0 %v554
    %1161 = vmatprep.subr.bf16.mxu0 0
    %1162 = vmatpush2.bf16.msra.mxu0 %v553
    %1163 = vmatprep.subr.bf16.mxu0 0
    %1164 = vmatpush2.bf16.msra.mxu0 %v552
    %1165 = vmatprep.subr.bf16.mxu0 0
    %1166 = vmatpush2.bf16.msra.mxu0 %v551
    %1167 = vmatprep.subr.bf16.mxu0 0
    %1168 = vmatpush2.bf16.msra.mxu0 %v550
    %1169 = vmatprep.mubr.bf16.mxu0 %v1136
    %1170 = vmatmul.mubr.bf16.gmra.mxu0 %v1135
    %v1171 = vpop.f32.mrf.mxu0
    %v1172 = vadd.f32 0.0, %v1171
    %v1173 = vpop.f32.mrf.mxu0
    %v1174 = vpop.f32.mrf.mxu0
    %v1175 = vpop.f32.mrf.mxu0
    %1176 = vdwg.mxu0
    %s1177 = scalar_lea.vmem [#allocation9], 48
    %1178 = vst [vmem:[%s1177] sm:$0xff] %v1172
    %s1179 = smul.u32 7, 2
    %s1180 = smul.addr %s1179, 8
    %s1181 = scalar_lea.vmem [#allocation3], %s1180
    %v1182 = vld [vmem:[%s1181] sm:$0xff]
    %v1183 = vld [vmem:[%s1181 + $0x8] sm:$0xff]
    %v1184 = vadd.f32 %v1182, %v136
    %v1185 = vadd.f32 %v1183, %v138
    %1186 = vmatprep.subr.bf16.mxu0 %v416
    %1187 = vmatpush1.bf16.msra.mxu0 %v415
    %1188 = vmatprep.subr.bf16.mxu0 %v414
    %1189 = vmatpush1.bf16.msra.mxu0 %v413
    %1190 = vmatprep.subr.bf16.mxu0 %v412
    %1191 = vmatpush1.bf16.msra.mxu0 %v411
    %1192 = vmatprep.subr.bf16.mxu0 %v410
    %1193 = vmatpush1.bf16.msra.mxu0 %v409
    %1194 = vmatprep.subr.bf16.mxu0 %v408
    %1195 = vmatpush1.bf16.msra.mxu0 %v407
    %1196 = vmatprep.subr.bf16.mxu0 %v406
    %1197 = vmatpush1.bf16.msra.mxu0 %v405
    %1198 = vmatprep.subr.bf16.mxu0 %v404
    %1199 = vmatpush1.bf16.msra.mxu0 %v403
    %1200 = vmatprep.subr.bf16.mxu0 %v402
    %1201 = vmatpush1.bf16.msra.mxu0 %v401
    %1202 = vmatprep.subr.bf16.mxu0 0
    %1203 = vmatpush2.bf16.msra.mxu0 0
    %1204 = vmatprep.subr.bf16.mxu0 0
    %1205 = vmatpush2.bf16.msra.mxu0 0
    %1206 = vmatprep.subr.bf16.mxu0 0
    %1207 = vmatpush2.bf16.msra.mxu0 0
    %1208 = vmatprep.subr.bf16.mxu0 0
    %1209 = vmatpush2.bf16.msra.mxu0 0
    %1210 = vmatprep.subr.bf16.mxu0 0
    %1211 = vmatpush2.bf16.msra.mxu0 0
    %1212 = vmatprep.subr.bf16.mxu0 0
    %1213 = vmatpush2.bf16.msra.mxu0 0
    %1214 = vmatprep.subr.bf16.mxu0 0
    %1215 = vmatpush2.bf16.msra.mxu0 0
    %1216 = vmatprep.subr.bf16.mxu0 0
    %1217 = vmatpush2.bf16.msra.mxu0 0
    %1218 = vmatprep.mubr.bf16.mxu0 0
    %1219 = vmatmul.mubr.bf16.gmra.mxu0 %v1135
    %v1220 = vpop.f32.mrf.mxu0
    %v1221 = vadd.f32 0.0, %v1220
    %v1222 = vpop.f32.mrf.mxu0
    %v1223 = vadd.f32 0.0, %v1222
    %v1224 = vpop.f32.mrf.mxu0
    %v1225 = vpop.f32.mrf.mxu0
    %1226 = vdwg.mxu0
    %v1227 = vadd.f32 %v1184, %v1221
    %v1228 = vadd.f32 %v1185, %v1223
    %v1229 = vpack.c.bf16 %v1227, %v1227
    %v1230 = vpack.c.bf16 %v1228, %v1228
    %1231 = vmatprep.subr.bf16.mxu0 0
    %1232 = vmatpush1.bf16.msra.mxu0 %v549
    %1233 = vmatprep.subr.bf16.mxu0 0
    %1234 = vmatpush1.bf16.msra.mxu0 %v548
    %1235 = vmatprep.subr.bf16.mxu0 0
    %1236 = vmatpush1.bf16.msra.mxu0 %v547
    %1237 = vmatprep.subr.bf16.mxu0 0
    %1238 = vmatpush1.bf16.msra.mxu0 %v546
    %1239 = vmatprep.subr.bf16.mxu0 0
    %1240 = vmatpush1.bf16.msra.mxu0 %v545
    %1241 = vmatprep.subr.bf16.mxu0 0
    %1242 = vmatpush1.bf16.msra.mxu0 %v544
    %1243 = vmatprep.subr.bf16.mxu0 0
    %1244 = vmatpush1.bf16.msra.mxu0 %v543
    %1245 = vmatprep.subr.bf16.mxu0 0
    %1246 = vmatpush1.bf16.msra.mxu0 %v542
    %1247 = vmatprep.subr.bf16.mxu0 0
    %1248 = vmatpush2.bf16.msra.mxu0 %v557
    %1249 = vmatprep.subr.bf16.mxu0 0
    %1250 = vmatpush2.bf16.msra.mxu0 %v556
    %1251 = vmatprep.subr.bf16.mxu0 0
    %1252 = vmatpush2.bf16.msra.mxu0 %v555
    %1253 = vmatprep.subr.bf16.mxu0 0
    %1254 = vmatpush2.bf16.msra.mxu0 %v554
    %1255 = vmatprep.subr.bf16.mxu0 0
    %1256 = vmatpush2.bf16.msra.mxu0 %v553
    %1257 = vmatprep.subr.bf16.mxu0 0
    %1258 = vmatpush2.bf16.msra.mxu0 %v552
    %1259 = vmatprep.subr.bf16.mxu0 0
    %1260 = vmatpush2.bf16.msra.mxu0 %v551
    %1261 = vmatprep.subr.bf16.mxu0 0
    %1262 = vmatpush2.bf16.msra.mxu0 %v550
    %1263 = vmatprep.mubr.bf16.mxu0 %v1230
    %1264 = vmatmul.mubr.bf16.gmra.mxu0 %v1229
    %v1265 = vpop.f32.mrf.mxu0
    %v1266 = vadd.f32 0.0, %v1265
    %v1267 = vpop.f32.mrf.mxu0
    %v1268 = vpop.f32.mrf.mxu0
    %v1269 = vpop.f32.mrf.mxu0
    %1270 = vdwg.mxu0
    %s1271 = scalar_lea.vmem [#allocation9], 56
    %1272 = vst [vmem:[%s1271] sm:$0xff] %v1266
    %1273 = vst [vmem:[#allocation2] sm:$0xff] %v1227
    %v1274 = vld [vmem:[#allocation9] sm:$0xff]
    %v1275 = vld [vmem:[#allocation9 + $0x8] sm:$0xff]
    %v1276 = vld [vmem:[#allocation9 + $0x10] sm:$0xff]
    %v1277 = vld [vmem:[#allocation9 + $0x18] sm:$0xff]
    %v1278 = vld [vmem:[#allocation9 + $0x20] sm:$0xff]
    %v1279 = vld [vmem:[#allocation9 + $0x28] sm:$0xff]
    %v1280 = vld [vmem:[#allocation9 + $0x30] sm:$0xff]
    %v1281 = vld [vmem:[#allocation9 + $0x38] sm:$0xff]
    %v1282 = vld [vmem:[%s8] sm:$0x1]
    %v1284 = vlaneseq
    %v1285 = vshrl.u32 %v1284, 7
    %v1286 = vsub.s32 0, %v1285
    %v1287 = vrot.slane %v1282, %v1286
    %v1289 = vadd.f32 %v1274, %v1287
    %v1290 = vadd.f32 %v1275, %v1287
    %v1291 = vadd.f32 %v1276, %v1287
    %v1292 = vadd.f32 %v1277, %v1287
    %v1293 = vadd.f32 %v1278, %v1287
    %v1294 = vadd.f32 %v1279, %v1287
    %v1295 = vadd.f32 %v1280, %v1287
    %v1296 = vadd.f32 %v1281, %v1287
    %1297 = vmax.xlane.f32.xlu0 %v1289
    %v1298 = vpop.xlane.xlu0 %1297
    %1299 = vmax.xlane.f32.xlu0 %v1290
    %v1300 = vpop.xlane.xlu0 %1299
    %1301 = vmax.xlane.f32.xlu0 %v1291
    %v1302 = vpop.xlane.xlu0 %1301
    %1303 = vmax.xlane.f32.xlu0 %v1292
    %v1304 = vpop.xlane.xlu0 %1303
    %1305 = vmax.xlane.f32.xlu0 %v1293
    %v1306 = vpop.xlane.xlu0 %1305
    %1307 = vmax.xlane.f32.xlu0 %v1294
    %v1308 = vpop.xlane.xlu0 %1307
    %1309 = vmax.xlane.f32.xlu0 %v1295
    %v1310 = vpop.xlane.xlu0 %1309
    %1311 = vmax.xlane.f32.xlu0 %v1296
    %v1312 = vpop.xlane.xlu0 %1311
    %v1313 = vsub.f32 %v1289, %v1298
    %v1314 = vsub.f32 %v1290, %v1300
    %v1315 = vsub.f32 %v1291, %v1302
    %v1316 = vsub.f32 %v1292, %v1304
    %v1317 = vsub.f32 %v1293, %v1306
    %v1318 = vsub.f32 %v1294, %v1308
    %v1319 = vsub.f32 %v1295, %v1310
    %v1320 = vsub.f32 %v1296, %v1312
    %v1321 = vmul.f32 %v1313, 1.442695
    %v1322 = vpow.pop %v1321
    %v1323 = vmul.f32 %v1314, 1.442695
    %v1324 = vpow.pop %v1323
    %v1325 = vmul.f32 %v1315, 1.442695
    %v1326 = vpow.pop %v1325
    %v1327 = vmul.f32 %v1316, 1.442695
    %v1328 = vpow.pop %v1327
    %v1329 = vmul.f32 %v1317, 1.442695
    %v1330 = vpow.pop %v1329
    %v1331 = vmul.f32 %v1318, 1.442695
    %v1332 = vpow.pop %v1331
    %v1333 = vmul.f32 %v1319, 1.442695
    %v1334 = vpow.pop %v1333
    %v1335 = vmul.f32 %v1320, 1.442695
    %v1336 = vpow.pop %v1335
    %1337 = vadd.xlane.f32.xlu0 %v1322
    %v1338 = vpop.xlane.xlu0 %1337
    %1339 = vadd.xlane.f32.xlu0 %v1324
    %v1340 = vpop.xlane.xlu0 %1339
    %1341 = vadd.xlane.f32.xlu0 %v1326
    %v1342 = vpop.xlane.xlu0 %1341
    %1343 = vadd.xlane.f32.xlu0 %v1328
    %v1344 = vpop.xlane.xlu0 %1343
    %1345 = vadd.xlane.f32.xlu0 %v1330
    %v1346 = vpop.xlane.xlu0 %1345
    %1347 = vadd.xlane.f32.xlu0 %v1332
    %v1348 = vpop.xlane.xlu0 %1347
    %1349 = vadd.xlane.f32.xlu0 %v1334
    %v1350 = vpop.xlane.xlu0 %1349
    %1351 = vadd.xlane.f32.xlu0 %v1336
    %v1352 = vpop.xlane.xlu0 %1351
    %v1353 = vlog2.pop %v1338
    %v1354 = vmul.f32 %v1353, 0.6931472
    %v1355 = vlog2.pop %v1340
    %v1356 = vmul.f32 %v1355, 0.6931472
    %v1357 = vlog2.pop %v1342
    %v1358 = vmul.f32 %v1357, 0.6931472
    %v1359 = vlog2.pop %v1344
    %v1360 = vmul.f32 %v1359, 0.6931472
    %v1361 = vlog2.pop %v1346
    %v1362 = vmul.f32 %v1361, 0.6931472
    %v1363 = vlog2.pop %v1348
    %v1364 = vmul.f32 %v1363, 0.6931472
    %v1365 = vlog2.pop %v1350
    %v1366 = vmul.f32 %v1365, 0.6931472
    %v1367 = vlog2.pop %v1352
    %v1368 = vmul.f32 %v1367, 0.6931472
    %v1369 = vsub.f32 %v1313, %v1354
    %v1370 = vsub.f32 %v1314, %v1356
    %v1371 = vsub.f32 %v1315, %v1358
    %v1372 = vsub.f32 %v1316, %v1360
    %v1373 = vsub.f32 %v1317, %v1362
    %v1374 = vsub.f32 %v1318, %v1364
    %v1375 = vsub.f32 %v1319, %v1366
    %v1376 = vsub.f32 %v1320, %v1368
    %1377 = vst [vmem:[#allocation9] sm:$0xff] %v1369
    %1378 = vst [vmem:[#allocation9 + $0x8] sm:$0xff] %v1370
    %1379 = vst [vmem:[#allocation9 + $0x10] sm:$0xff] %v1371
    %1380 = vst [vmem:[#allocation9 + $0x18] sm:$0xff] %v1372
    %1381 = vst [vmem:[#allocation9 + $0x20] sm:$0xff] %v1373
    %1382 = vst [vmem:[#allocation9 + $0x28] sm:$0xff] %v1374
    %1383 = vst [vmem:[#allocation9 + $0x30] sm:$0xff] %v1375
    %1384 = vst [vmem:[#allocation9 + $0x38] sm:$0xff] %v1376
    // Predicated region
    $region50: #{tpu_custom_call.1} parent=1 // pred_check
      %p1385 = pneg %p65
    $region51: #{tpu_custom_call.1} parent=1 // pred_check_branch
      %1387 = sbr.rel (%p1385) target = $region53
    $region52: #{tpu_custom_call.1} parent=1 // pred_region
      %1388 = vst [vmem:[#allocation10] sm:$0xff] %v1227
    $region53: #{tpu_custom_call.1} parent=1 // pred_fallthru
      _
    // Predicated region
    $region54: #{tpu_custom_call.1} parent=1 // pred_check
      _
    $region55: #{tpu_custom_call.1} parent=1 // pred_check_branch
      %1390 = sbr.rel (0) target = $region57
    $region56: #{tpu_custom_call.1} parent=1 // pred_region
      %s1392 = ssub.s32 1024, 1024
      %1393 = vsyncadd [#allocation6], %s1392
      %s1394 = sshll.u32 [#allocation9], 4
      %s1395 = int_to_ptr.vmem [resolvable:$true] %s1394
      %1400 = dma.vmem_to_hbm [thread:$0]  %s1395, 1024, %s9, [#allocation6], 128, 128, 8
    $region57: #{tpu_custom_call.1} parent=1 // pred_fallthru
      _
    // Predicated region
    $region58: #{tpu_custom_call.1} parent=1 // pred_check
      _
    $region59: #{tpu_custom_call.1} parent=1 // pred_check_branch
      %1402 = sbr.rel (0) target = $region61
    $region60: #{tpu_custom_call.1} parent=1 // pred_region
      %s1404 = ssub.s32 128, 128
      %1405 = vsyncadd [#allocation11], %s1404
      %s1407 = sshll.u32 [#allocation10], 4
      %s1408 = int_to_ptr.vmem [resolvable:$true] %s1407
      %1410 = dma.vmem_to_hbm [thread:$0]  %s1408, 128, %s10, [#allocation11]
    $region61: #{tpu_custom_call.1} parent=1 // pred_fallthru
      _
    // Predicated region
    $region62: #{tpu_custom_call.1} parent=1 // pred_check
      _
    $region63: #{tpu_custom_call.1} parent=1 // pred_check_branch
      %1412 = sbr.rel (0) target = $region65
    $region64: #{tpu_custom_call.1} parent=1 // pred_region
      %1413 = dma.done [#allocation6], 1024
    $region65: #{tpu_custom_call.1} parent=1 // pred_fallthru
      _
    // Predicated region
    $region66: #{tpu_custom_call.1} parent=1 // pred_check
      _
    $region67: #{tpu_custom_call.1} parent=1 // pred_check_branch
      %1415 = sbr.rel (0) target = $region69
    $region68: #{tpu_custom_call.1} parent=1 // pred_region
      %1416 = dma.done [#allocation11], 128
    $region69: #{tpu_custom_call.1} parent=1 // pred_fallthru
      _
    %1417 = vsyncpa [#allocation5], 1
    %1418 = vsyncpa [#allocation8], 1
    %1419 = vsyncpa [#allocation6], 1
    %1420 = vsyncpa [#allocation11], 1

</llo_original>
